<compile_context>
chip_gen: v5e
topology: v5e:2x2
jax: 0.10.0
libtpu: 0.0.40
codegen_flags: <defaults>
</compile_context>

<pallas_src>
import functools

import jax
import jax.numpy as jnp
from jax import lax
from jax.experimental import pallas as pl
from jax.experimental.pallas import tpu as pltpu

# ---------------------------------------------------------------------------
# Model hyper-parameters (mirroring FlowPredictionModel.__init__).
# obs_func is modeled as a deterministic Linear(OBS_IN -> OBS_SIZE).
# ---------------------------------------------------------------------------
OBS_IN = 8          # raw observation feature size (input to obs_func)
OBS_SIZE = 8        # obs_func.output_size
TS_SIZE = 4         # ts_size = 4
INPUT_SIZE = OBS_SIZE + TS_SIZE     # input to input_layer (after obs_func)
RAW_IN = OBS_IN + TS_SIZE           # raw [obs, ts] concat fed to the kernel
HIDDEN = 4          # self.hidden_size = 4
EPS = 1e-5          # BatchNorm1d default eps

# Packed-parameter layout (rows 8-aligned so in-kernel slices stay
# sublane-aligned).
_WP_ROWS, _WP_COLS = 40, 16     # matrix pack
_VP_ROWS, _VP_COLS = 8, 16      # vector pack


# ---------------------------------------------------------------------------
# Pallas kernel: one grid step == one chunk of timesteps.
# ---------------------------------------------------------------------------
def _fp_kernel(x_ref, wp_ref, vp_ref, out_ref, h_scr, c_scr, hall_scr, pg_scr,
               *, unroll):
    t_chunk, batch, _ = x_ref.shape

    # reset(): h, C start at zeros at the beginning of the sequence.
    @pl.when(pl.program_id(0) == 0)
    def _():
        h_scr[...] = jnp.zeros_like(h_scr)
        c_scr[...] = jnp.zeros_like(c_scr)

    # Unpack parameters (static slices of two small VMEM tiles).
    wp = wp_ref[...]
    vp = vp_ref[...]
    w_in = wp[0:RAW_IN, 0:HIDDEN]                 # fused obs_func + input Linear
    wih_t = wp[16:16 + HIDDEN, 0:4 * HIDDEN]      # LSTM input->gates
    whh_t = wp[24:24 + HIDDEN, 0:4 * HIDDEN]      # LSTM hidden->gates
    w2t = wp[32:32 + OBS_SIZE, 0:HIDDEN]          # output Linear (transposed)
    b2c = wp[32:32 + OBS_SIZE, 8:9]               # output bias as a column
    b_f = vp[0:1, 0:HIDDEN]                       # fused input bias
    g1 = vp[1:2, 0:HIDDEN]
    be1 = vp[2:3, 0:HIDDEN]
    b_l = vp[3:4, 0:4 * HIDDEN]                   # bih + bhh
    g2 = vp[4:5, 0:HIDDEN]
    be2 = vp[5:6, 0:HIDDEN]

    # ---- chunk-level (non-recurrent) work, hoisted out of the time loop ----
    x = x_ref[...]                                        # (T, B, RAW_IN)
    xf = x.reshape(t_chunk * batch, RAW_IN)
    z = (jnp.dot(xf, w_in, preferred_element_type=jnp.float32) + b_f
         ).reshape(t_chunk, batch, HIDDEN)

    # BatchNorm1d (training-mode, per-timestep batch stats, biased var) + ReLU
    mu1 = jnp.mean(z, axis=1, keepdims=True)
    var1 = jnp.mean((z - mu1) ** 2, axis=1, keepdims=True)
    a = jnp.maximum((z - mu1) * lax.rsqrt(var1 + EPS) * g1 + be1, 0.0)

    # Input half of the LSTM gates for the whole chunk (one matmul).
    af = a.reshape(t_chunk * batch, HIDDEN)
    pg = jnp.dot(af, wih_t, preferred_element_type=jnp.float32) + b_l
    pg_scr[...] = pg.reshape(t_chunk, batch, 4 * HIDDEN)

    # ---- serial recurrence: only h @ whh_t + pointwise updates per step ----
    def step(t, carry):
        h, c = carry
        # TODO(synk): on v5e/v6e benchmark a VPU broadcast-mul-add form of this
        # tiny (B,4)x(4,16) dot to avoid MXU result-FIFO latency.
        gates = pg_scr[t] + jnp.dot(h, whh_t,
                                    preferred_element_type=jnp.float32)
        sig = jax.nn.sigmoid(gates)       # whole-vreg EUP pass (i, f, o)
        tnh = jnp.tanh(gates)             # whole-vreg EUP pass (g)
        i_g = sig[:, 0 * HIDDEN:1 * HIDDEN]
        f_g = sig[:, 1 * HIDDEN:2 * HIDDEN]
        g_g = tnh[:, 2 * HIDDEN:3 * HIDDEN]
        o_g = sig[:, 3 * HIDDEN:4 * HIDDEN]
        c = f_g * c + i_g * g_g
        h = o_g * jnp.tanh(c)
        hall_scr[t] = h
        return (h, c)

    h, c = lax.fori_loop(0, t_chunk, step, (h_scr[...], c_scr[...]),
                         unroll=unroll)
    # Spill recurrent state for the next chunk.
    h_scr[...] = h
    c_scr[...] = c

    # ---- output layer for the whole chunk: BatchNorm2 + Linear -------------
    hall = hall_scr[...]                                  # (T, B, H)
    mu2 = jnp.mean(hall, axis=1, keepdims=True)
    var2 = jnp.mean((hall - mu2) ** 2, axis=1, keepdims=True)
    hb = (hall - mu2) * lax.rsqrt(var2 + EPS) * g2 + be2
    hbf = hb.reshape(t_chunk * batch, HIDDEN)
    # yT = (hbf @ w2).T computed directly by contracting HIDDEN of both
    # operands (lane-dense output, no in-kernel transpose needed).
    yT = lax.dot_general(w2t, hbf, (((1,), (1,)), ((), ())),
                         preferred_element_type=jnp.float32) + b2c
    out_ref[...] = yT                                     # (OBS_SIZE, T*B)


# ---------------------------------------------------------------------------
# Wrapper: fold / pack weights, then one pallas_call over time chunks.
# ---------------------------------------------------------------------------
@jax.jit
def flow_prediction_forward(obs, ts, params):
    S, B, _ = obs.shape
    f32 = jnp.float32

    # Time chunk per grid step: full sequence unless it is very long.
    if S <= 1024:
        t_chunk = S
    else:
        t_chunk = 1024
        assert S % t_chunk == 0, "seq_len must be a multiple of 1024"
        assert (t_chunk * B) % 128 == 0, "chunked output block must be lane-aligned"
    num_chunks = S // t_chunk
    unroll = max(1, min(8, t_chunk))

    # One input DMA stream: concat raw obs and ts.
    x = jnp.concatenate([obs, ts], axis=2)                    # (S, B, RAW_IN)

    # --- fold obs_func into the input layer ---------------------------------
    w_f = params["wobs"] @ params["w1a"]                      # (OBS_IN, HIDDEN)
    b_f = params["bobs"] @ params["w1a"] + params["b1"]       # (1, HIDDEN)
    w_in = jnp.concatenate([w_f, params["w1b"]], axis=0)      # (RAW_IN, HIDDEN)
    b_l = params["bih"] + params["bhh"]                       # (1, 4H)

    # --- pack matrices into one (40,16) tile, vectors into one (8,16) tile --
    w_pack = jnp.zeros((_WP_ROWS, _WP_COLS), f32)
    w_pack = w_pack.at[0:RAW_IN, 0:HIDDEN].set(w_in)
    w_pack = w_pack.at[16:16 + HIDDEN, 0:4 * HIDDEN].set(params["wih_t"])
    w_pack = w_pack.at[24:24 + HIDDEN, 0:4 * HIDDEN].set(params["whh_t"])
    w_pack = w_pack.at[32:32 + OBS_SIZE, 0:HIDDEN].set(params["w2"].T)
    w_pack = w_pack.at[32:32 + OBS_SIZE, 8].set(params["b2"][0])   # b2 column

    v_pack = jnp.zeros((_VP_ROWS, _VP_COLS), f32)
    v_pack = v_pack.at[0, 0:HIDDEN].set(b_f[0])
    v_pack = v_pack.at[1, 0:HIDDEN].set(params["g1"][0])
    v_pack = v_pack.at[2, 0:HIDDEN].set(params["be1"][0])
    v_pack = v_pack.at[3, 0:4 * HIDDEN].set(b_l[0])
    v_pack = v_pack.at[4, 0:HIDDEN].set(params["g2"][0])
    v_pack = v_pack.at[5, 0:HIDDEN].set(params["be2"][0])

    kernel = functools.partial(_fp_kernel, unroll=unroll)

    out_t = pl.pallas_call(
        kernel,
        out_shape=jax.ShapeDtypeStruct((OBS_SIZE, S * B), f32),
        grid_spec=pltpu.PrefetchScalarGridSpec(
            num_scalar_prefetch=0,
            grid=(num_chunks,),
            in_specs=[
                pl.BlockSpec((t_chunk, B, RAW_IN), lambda i: (i, 0, 0)),
                pl.BlockSpec((_WP_ROWS, _WP_COLS), lambda i: (0, 0)),
                pl.BlockSpec((_VP_ROWS, _VP_COLS), lambda i: (0, 0)),
            ],
            out_specs=pl.BlockSpec((OBS_SIZE, t_chunk * B), lambda i: (0, i)),
            scratch_shapes=[
                pltpu.VMEM((B, HIDDEN), f32),               # h  (across chunks)
                pltpu.VMEM((B, HIDDEN), f32),               # C  (across chunks)
                pltpu.VMEM((t_chunk, B, HIDDEN), f32),      # per-step h stash
                pltpu.VMEM((t_chunk, B, 4 * HIDDEN), f32),  # pre-gates
            ],
        ),
        compiler_params=pltpu.CompilerParams(
            # time axis is a recurrence -> must stay sequential
            dimension_semantics=("arbitrary",),
            # explicit limit keeps chunk sizing portable to v7x's 64 MiB VMEM
            vmem_limit_bytes=32 * 1024 * 1024,
        ),
    )(x, w_pack, v_pack)

    # Lane-dense (OBS_SIZE, S*B) -> (S, B, OBS_SIZE): pure XLA layout plumbing.
    return out_t.T.reshape(S, B, OBS_SIZE)


# ---------------------------------------------------------------------------
# Deterministic parameter init (synthetic; mirrors the __init__ shapes).
# LSTM weight_ih / weight_hh 4x4 gate blocks are orthogonally initialized,
# matching the reference module.
# ---------------------------------------------------------------------------
def _orthogonal(key, n):
    a = jax.random.normal(key, (n, n), jnp.float32)
    q, r = jnp.linalg.qr(a)
    return q * jnp.sign(jnp.diagonal(r))[None, :]


def init_params(key):
    ks = jax.random.split(key, 16)
    scale = 0.3
    p = {}
    # obs_func: Linear(OBS_IN, OBS_SIZE)
    p["wobs"] = scale * jax.random.normal(ks[0], (OBS_IN, OBS_SIZE), jnp.float32)
    p["bobs"] = scale * jax.random.normal(ks[1], (1, OBS_SIZE), jnp.float32)
    # input_layer Linear(INPUT_SIZE, HIDDEN), split into obs / ts halves
    w1 = scale * jax.random.normal(ks[2], (INPUT_SIZE, HIDDEN), jnp.float32)
    p["w1a"] = w1[:OBS_SIZE]
    p["w1b"] = w1[OBS_SIZE:]
    p["b1"] = scale * jax.random.normal(ks[3], (1, HIDDEN), jnp.float32)
    # BatchNorm1d defaults: gamma=1, beta=0
    p["g1"] = jnp.ones((1, HIDDEN), jnp.float32)
    p["be1"] = jnp.zeros((1, HIDDEN), jnp.float32)
    # LSTMCell weights, PyTorch layout (4H, H); each H x H gate block orthogonal
    wih_blocks = [_orthogonal(ks[4 + i], HIDDEN) for i in range(4)]
    whh_blocks = [_orthogonal(ks[8 + i], HIDDEN) for i in range(4)]
    wih = jnp.concatenate(wih_blocks, axis=0)   # (4H, H)
    whh = jnp.concatenate(whh_blocks, axis=0)   # (4H, H)
    p["wih_t"] = wih.T                          # (H, 4H) — kernel does x @ W
    p["whh_t"] = whh.T
    p["bih"] = scale * jax.random.normal(ks[12], (1, 4 * HIDDEN), jnp.float32)
    p["bhh"] = scale * jax.random.normal(ks[13], (1, 4 * HIDDEN), jnp.float32)
    # output_layer: BatchNorm1d + Linear(HIDDEN, OBS_SIZE)
    p["g2"] = jnp.ones((1, HIDDEN), jnp.float32)
    p["be2"] = jnp.zeros((1, HIDDEN), jnp.float32)
    p["w2"] = scale * jax.random.normal(ks[14], (HIDDEN, OBS_SIZE), jnp.float32)
    p["b2"] = scale * jax.random.normal(ks[15], (1, OBS_SIZE), jnp.float32)
    return p


# ---------------------------------------------------------------------------
# Pure-JAX reference (mirrors the PyTorch forward) for correctness check.
# ---------------------------------------------------------------------------
def reference_forward(obs, ts, p):
    S, B, _ = obs.shape
    obs_p = obs.reshape(S * B, -1) @ p["wobs"] + p["bobs"]
    obs_p = obs_p.reshape(S, B, -1)
    x = jnp.concatenate([obs_p, ts], axis=2)
    w1 = jnp.concatenate([p["w1a"], p["w1b"]], axis=0)

    def bn(v):
        mu = jnp.mean(v, axis=0, keepdims=True)
        var = jnp.mean((v - mu) ** 2, axis=0, keepdims=True)
        return (v - mu) * lax.rsqrt(var + EPS)

    h = jnp.zeros((B, HIDDEN), jnp.float32)
    c = jnp.zeros((B, HIDDEN), jnp.float32)
    outs = []
    for i in range(S):
        z = x[i] @ w1 + p["b1"]
        a = jnp.maximum(bn(z) * p["g1"] + p["be1"], 0.0)
        gates = a @ p["wih_t"] + p["bih"] + h @ p["whh_t"] + p["bhh"]
        i_g, f_g, g_g, o_g = jnp.split(gates, 4, axis=1)
        c = jax.nn.sigmoid(f_g) * c + jax.nn.sigmoid(i_g) * jnp.tanh(g_g)
        h = jax.nn.sigmoid(o_g) * jnp.tanh(c)
        y = (bn(h) * p["g2"] + p["be2"]) @ p["w2"] + p["b2"]
        outs.append(y[None])
    return jnp.concatenate(outs, axis=0)


# ---------------------------------------------------------------------------
if __name__ == "__main__":
    SEQ, BATCH = 8, 8
    key = jax.random.PRNGKey(0)
    k_obs, k_ts, k_par = jax.random.split(key, 3)

    obs = jax.random.normal(k_obs, (SEQ, BATCH, OBS_IN), jnp.float32)
    ts = jax.random.normal(k_ts, (SEQ, BATCH, TS_SIZE), jnp.float32)
    params = init_params(k_par)

    out = flow_prediction_forward(obs, ts, params)
    out = jax.block_until_ready(out)

    ref = reference_forward(obs, ts, params)
    assert out.shape == (SEQ, BATCH, OBS_SIZE)
    assert jnp.allclose(out, ref, rtol=2e-4, atol=2e-4), \
        f"max abs err {jnp.max(jnp.abs(out - ref))}"

    print("KERNEL_OK")
</pallas_src>

<mosaic_0001>
module attributes {stable_mosaic.version = 11 : i64} {
  func.func @_fp_kernel(%arg0: i32, %arg1: memref<8x8x12xf32, #tpu.memory_space<vmem>>, %arg2: memref<40x16xf32, #tpu.memory_space<vmem>>, %arg3: memref<8x16xf32, #tpu.memory_space<vmem>>, %arg4: memref<8x64xf32, #tpu.memory_space<vmem>>, %arg5: memref<8x4xf32, #tpu.memory_space<vmem>>, %arg6: memref<8x4xf32, #tpu.memory_space<vmem>>, %arg7: memref<8x8x4xf32, #tpu.memory_space<vmem>>, %arg8: memref<8x8x16xf32, #tpu.memory_space<vmem>>) attributes {dimension_semantics = [#tpu.dimension_semantics<arbitrary>], iteration_bounds = array<i64: 1>, scalar_prefetch = 0 : i64, scratch_operands = 4 : i64, tpu.core_type = #tpu.core_type<tc>, window_params = [{transform_indices = @transform_0, window_bounds = array<i64: 8, 8, 12>}, {pipeline_mode = #tpu.pipeline_mode<synchronous>, transform_indices = @transform_1, window_bounds = array<i64: 40, 16>}, {pipeline_mode = #tpu.pipeline_mode<synchronous>, transform_indices = @transform_2, window_bounds = array<i64: 8, 16>}, {transform_indices = @transform_3, window_bounds = array<i64: 8, 64>}]} {
    %c0_i32 = arith.constant 0 : i32
    %0 = arith.cmpi eq, %arg0, %c0_i32 : i32
    %1 = arith.extui %0 : i1 to i32
    %c0_i32_0 = arith.constant 0 : i32
    %2 = arith.cmpi ne, %1, %c0_i32_0 : i32
    scf.if %2 {
      %cst_85 = arith.constant 0.000000e+00 : f32
      %280 = vector.broadcast %cst_85 : f32 to vector<8x4xf32>
      %c0_86 = arith.constant 0 : index
      %c0_87 = arith.constant 0 : index
      %281 = vector.load %arg5[%c0_86, %c0_87] : memref<8x4xf32, #tpu.memory_space<vmem>>, vector<8x4xf32>
      tpu.vector_store %arg5[%c0_86, %c0_87], %280 {strides = array<i32>} : memref<8x4xf32, #tpu.memory_space<vmem>>, vector<8x4xf32>,
      %cst_88 = arith.constant 0.000000e+00 : f32
      %282 = vector.broadcast %cst_88 : f32 to vector<8x4xf32>
      %c0_89 = arith.constant 0 : index
      %c0_90 = arith.constant 0 : index
      %283 = vector.load %arg6[%c0_89, %c0_90] : memref<8x4xf32, #tpu.memory_space<vmem>>, vector<8x4xf32>
      tpu.vector_store %arg6[%c0_89, %c0_90], %282 {strides = array<i32>} : memref<8x4xf32, #tpu.memory_space<vmem>>, vector<8x4xf32>,
    } else {
    }
    %c0 = arith.constant 0 : index
    %c0_1 = arith.constant 0 : index
    %3 = vector.load %arg2[%c0, %c0_1] : memref<40x16xf32, #tpu.memory_space<vmem>>, vector<40x16xf32>
    %c0_2 = arith.constant 0 : index
    %c0_3 = arith.constant 0 : index
    %4 = vector.load %arg3[%c0_2, %c0_3] : memref<8x16xf32, #tpu.memory_space<vmem>>, vector<8x16xf32>
    %5 = vector.extract_strided_slice %3 {offsets = [0, 0], sizes = [12, 4], strides = [1, 1]} : vector<40x16xf32> to vector<12x4xf32>
    %6 = vector.extract_strided_slice %3 {offsets = [16, 0], sizes = [4, 16], strides = [1, 1]} : vector<40x16xf32> to vector<4x16xf32>
    %7 = vector.extract_strided_slice %3 {offsets = [24, 0], sizes = [4, 16], strides = [1, 1]} : vector<40x16xf32> to vector<4x16xf32>
    %8 = vector.extract_strided_slice %3 {offsets = [32, 0], sizes = [8, 4], strides = [1, 1]} : vector<40x16xf32> to vector<8x4xf32>
    %9 = vector.extract_strided_slice %3 {offsets = [32, 8], sizes = [8, 1], strides = [1, 1]} : vector<40x16xf32> to vector<8x1xf32>
    %10 = vector.extract_strided_slice %4 {offsets = [0, 0], sizes = [1, 4], strides = [1, 1]} : vector<8x16xf32> to vector<1x4xf32>
    %11 = vector.extract_strided_slice %4 {offsets = [1, 0], sizes = [1, 4], strides = [1, 1]} : vector<8x16xf32> to vector<1x4xf32>
    %12 = vector.extract_strided_slice %4 {offsets = [2, 0], sizes = [1, 4], strides = [1, 1]} : vector<8x16xf32> to vector<1x4xf32>
    %13 = vector.extract_strided_slice %4 {offsets = [3, 0], sizes = [1, 16], strides = [1, 1]} : vector<8x16xf32> to vector<1x16xf32>
    %14 = vector.extract_strided_slice %4 {offsets = [4, 0], sizes = [1, 4], strides = [1, 1]} : vector<8x16xf32> to vector<1x4xf32>
    %15 = vector.extract_strided_slice %4 {offsets = [5, 0], sizes = [1, 4], strides = [1, 1]} : vector<8x16xf32> to vector<1x4xf32>
    %c0_4 = arith.constant 0 : index
    %c0_5 = arith.constant 0 : index
    %c0_6 = arith.constant 0 : index
    %16 = vector.load %arg1[%c0_4, %c0_5, %c0_6] : memref<8x8x12xf32, #tpu.memory_space<vmem>>, vector<8x8x12xf32>
    %17 = vector.shape_cast %16 : vector<8x8x12xf32> to vector<64x12xf32>
    %cst = arith.constant dense<0.000000e+00> : vector<64x4xf32>
    %18 = tpu.matmul %17, %5, %cst {dimension_numbers = #tpu.dot_dimension_numbers<[1], [0], [0], [1], [0, 0, 1, 1], [], []>} : vector<64x12xf32>, vector<12x4xf32>, vector<64x4xf32> -> vector<64x4xf32>
    %19 = vector.broadcast %10 : vector<1x4xf32> to vector<64x4xf32>
    %20 = arith.addf %18, %19 : vector<64x4xf32>
    %21 = vector.shape_cast %20 : vector<64x4xf32> to vector<8x8x4xf32>
    %cst_7 = arith.constant dense<0.000000e+00> : vector<8x4xf32>
    %22 = vector.multi_reduction <add>, %21, %cst_7 [1] : vector<8x8x4xf32> to vector<8x4xf32>
    %23 = vector.shape_cast %22 : vector<8x4xf32> to vector<8x1x4xf32>
    %cst_8 = arith.constant 8.000000e+00 : f32
    %24 = vector.broadcast %cst_8 : f32 to vector<8x1x4xf32>
    %25 = arith.divf %23, %24 : vector<8x1x4xf32>
    %26 = vector.broadcast %25 : vector<8x1x4xf32> to vector<8x8x4xf32>
    %27 = arith.subf %21, %26 : vector<8x8x4xf32>
    %28 = arith.mulf %27, %27 : vector<8x8x4xf32>
    %cst_9 = arith.constant dense<0.000000e+00> : vector<8x4xf32>
    %29 = vector.multi_reduction <add>, %28, %cst_9 [1] : vector<8x8x4xf32> to vector<8x4xf32>
    %30 = vector.shape_cast %29 : vector<8x4xf32> to vector<8x1x4xf32>
    %cst_10 = arith.constant 8.000000e+00 : f32
    %31 = vector.broadcast %cst_10 : f32 to vector<8x1x4xf32>
    %32 = arith.divf %30, %31 : vector<8x1x4xf32>
    %33 = vector.broadcast %25 : vector<8x1x4xf32> to vector<8x8x4xf32>
    %34 = arith.subf %21, %33 : vector<8x8x4xf32>
    %cst_11 = arith.constant 9.99999974E-6 : f32
    %35 = vector.broadcast %cst_11 : f32 to vector<8x1x4xf32>
    %36 = arith.addf %32, %35 : vector<8x1x4xf32>
    %37 = math.rsqrt %36 : vector<8x1x4xf32>
    %38 = vector.broadcast %37 : vector<8x1x4xf32> to vector<8x8x4xf32>
    %39 = arith.mulf %34, %38 : vector<8x8x4xf32>
    %40 = vector.shape_cast %11 : vector<1x4xf32> to vector<1x1x4xf32>
    %41 = vector.broadcast %40 : vector<1x1x4xf32> to vector<8x8x4xf32>
    %42 = arith.mulf %39, %41 : vector<8x8x4xf32>
    %43 = vector.shape_cast %12 : vector<1x4xf32> to vector<1x1x4xf32>
    %44 = vector.broadcast %43 : vector<1x1x4xf32> to vector<8x8x4xf32>
    %45 = arith.addf %42, %44 : vector<8x8x4xf32>
    %cst_12 = arith.constant 0.000000e+00 : f32
    %46 = vector.broadcast %cst_12 : f32 to vector<8x8x4xf32>
    %47 = arith.maximumf %45, %46 : vector<8x8x4xf32>
    %48 = vector.shape_cast %47 : vector<8x8x4xf32> to vector<64x4xf32>
    %cst_13 = arith.constant dense<0.000000e+00> : vector<64x16xf32>
    %49 = tpu.matmul %48, %6, %cst_13 {dimension_numbers = #tpu.dot_dimension_numbers<[1], [0], [0], [1], [0, 0, 1, 1], [], []>} : vector<64x4xf32>, vector<4x16xf32>, vector<64x16xf32> -> vector<64x16xf32>
    %50 = vector.broadcast %13 : vector<1x16xf32> to vector<64x16xf32>
    %51 = arith.addf %49, %50 : vector<64x16xf32>
    %52 = vector.shape_cast %51 : vector<64x16xf32> to vector<8x8x16xf32>
    %c0_14 = arith.constant 0 : index
    %c0_15 = arith.constant 0 : index
    %c0_16 = arith.constant 0 : index
    %53 = vector.load %arg8[%c0_14, %c0_15, %c0_16] : memref<8x8x16xf32, #tpu.memory_space<vmem>>, vector<8x8x16xf32>
    tpu.vector_store %arg8[%c0_14, %c0_15, %c0_16], %52 {strides = array<i32>} : memref<8x8x16xf32, #tpu.memory_space<vmem>>, vector<8x8x16xf32>,
    %c0_17 = arith.constant 0 : index
    %c0_18 = arith.constant 0 : index
    %54 = vector.load %arg5[%c0_17, %c0_18] : memref<8x4xf32, #tpu.memory_space<vmem>>, vector<8x4xf32>
    %c0_19 = arith.constant 0 : index
    %c0_20 = arith.constant 0 : index
    %55 = vector.load %arg6[%c0_19, %c0_20] : memref<8x4xf32, #tpu.memory_space<vmem>>, vector<8x4xf32>
    %c0_i32_21 = arith.constant 0 : i32
    %56 = arith.index_cast %c0_i32_21 : i32 to index
    %c0_22 = arith.constant 0 : index
    %c0_23 = arith.constant 0 : index
    %57 = vector.load %arg8[%56, %c0_22, %c0_23] : memref<8x8x16xf32, #tpu.memory_space<vmem>>, vector<1x8x16xf32>
    %58 = vector.shape_cast %57 : vector<1x8x16xf32> to vector<8x16xf32>
    %cst_24 = arith.constant dense<0.000000e+00> : vector<8x16xf32>
    %59 = tpu.matmul %54, %7, %cst_24 {dimension_numbers = #tpu.dot_dimension_numbers<[1], [0], [0], [1], [0, 0, 1, 1], [], []>} : vector<8x4xf32>, vector<4x16xf32>, vector<8x16xf32> -> vector<8x16xf32>
    %60 = arith.addf %58, %59 : vector<8x16xf32>
    %61 = arith.negf %60 : vector<8x16xf32>
    %62 = math.exp %61 : vector<8x16xf32>
    %cst_25 = arith.constant 1.000000e+00 : f32
    %63 = vector.broadcast %cst_25 : f32 to vector<8x16xf32>
    %64 = arith.addf %63, %62 : vector<8x16xf32>
    %65 = arith.divf %63, %64 : vector<8x16xf32>
    %66 = math.tanh %60 : vector<8x16xf32>
    %67 = vector.extract_strided_slice %65 {offsets = [0, 0], sizes = [8, 4], strides = [1, 1]} : vector<8x16xf32> to vector<8x4xf32>
    %68 = vector.extract_strided_slice %65 {offsets = [0, 4], sizes = [8, 4], strides = [1, 1]} : vector<8x16xf32> to vector<8x4xf32>
    %69 = vector.extract_strided_slice %66 {offsets = [0, 8], sizes = [8, 4], strides = [1, 1]} : vector<8x16xf32> to vector<8x4xf32>
    %70 = vector.extract_strided_slice %65 {offsets = [0, 12], sizes = [8, 4], strides = [1, 1]} : vector<8x16xf32> to vector<8x4xf32>
    %71 = arith.mulf %68, %55 : vector<8x4xf32>
    %72 = arith.mulf %67, %69 : vector<8x4xf32>
    %73 = arith.addf %71, %72 : vector<8x4xf32>
    %74 = math.tanh %73 : vector<8x4xf32>
    %75 = arith.mulf %70, %74 : vector<8x4xf32>
    %76 = arith.index_cast %c0_i32_21 : i32 to index
    %c0_26 = arith.constant 0 : index
    %c0_27 = arith.constant 0 : index
    %77 = vector.load %arg7[%76, %c0_26, %c0_27] : memref<8x8x4xf32, #tpu.memory_space<vmem>>, vector<1x8x4xf32>
    %78 = vector.shape_cast %77 : vector<1x8x4xf32> to vector<8x4xf32>
    %79 = vector.shape_cast %75 : vector<8x4xf32> to vector<1x8x4xf32>
    tpu.vector_store %arg7[%76, %c0_26, %c0_27], %79 {strides = array<i32>} : memref<8x8x4xf32, #tpu.memory_space<vmem>>, vector<1x8x4xf32>,
    %c1_i32 = arith.constant 1 : i32
    %80 = arith.index_cast %c1_i32 : i32 to index
    %c0_28 = arith.constant 0 : index
    %c0_29 = arith.constant 0 : index
    %81 = vector.load %arg8[%80, %c0_28, %c0_29] : memref<8x8x16xf32, #tpu.memory_space<vmem>>, vector<1x8x16xf32>
    %82 = vector.shape_cast %81 : vector<1x8x16xf32> to vector<8x16xf32>
    %cst_30 = arith.constant dense<0.000000e+00> : vector<8x16xf32>
    %83 = tpu.matmul %75, %7, %cst_30 {dimension_numbers = #tpu.dot_dimension_numbers<[1], [0], [0], [1], [0, 0, 1, 1], [], []>} : vector<8x4xf32>, vector<4x16xf32>, vector<8x16xf32> -> vector<8x16xf32>
    %84 = arith.addf %82, %83 : vector<8x16xf32>
    %85 = arith.negf %84 : vector<8x16xf32>
    %86 = math.exp %85 : vector<8x16xf32>
    %cst_31 = arith.constant 1.000000e+00 : f32
    %87 = vector.broadcast %cst_31 : f32 to vector<8x16xf32>
    %88 = arith.addf %87, %86 : vector<8x16xf32>
    %89 = arith.divf %87, %88 : vector<8x16xf32>
    %90 = math.tanh %84 : vector<8x16xf32>
    %91 = vector.extract_strided_slice %89 {offsets = [0, 0], sizes = [8, 4], strides = [1, 1]} : vector<8x16xf32> to vector<8x4xf32>
    %92 = vector.extract_strided_slice %89 {offsets = [0, 4], sizes = [8, 4], strides = [1, 1]} : vector<8x16xf32> to vector<8x4xf32>
    %93 = vector.extract_strided_slice %90 {offsets = [0, 8], sizes = [8, 4], strides = [1, 1]} : vector<8x16xf32> to vector<8x4xf32>
    %94 = vector.extract_strided_slice %89 {offsets = [0, 12], sizes = [8, 4], strides = [1, 1]} : vector<8x16xf32> to vector<8x4xf32>
    %95 = arith.mulf %92, %73 : vector<8x4xf32>
    %96 = arith.mulf %91, %93 : vector<8x4xf32>
    %97 = arith.addf %95, %96 : vector<8x4xf32>
    %98 = math.tanh %97 : vector<8x4xf32>
    %99 = arith.mulf %94, %98 : vector<8x4xf32>
    %100 = arith.index_cast %c1_i32 : i32 to index
    %c0_32 = arith.constant 0 : index
    %c0_33 = arith.constant 0 : index
    %101 = vector.load %arg7[%100, %c0_32, %c0_33] : memref<8x8x4xf32, #tpu.memory_space<vmem>>, vector<1x8x4xf32>
    %102 = vector.shape_cast %101 : vector<1x8x4xf32> to vector<8x4xf32>
    %103 = vector.shape_cast %99 : vector<8x4xf32> to vector<1x8x4xf32>
    tpu.vector_store %arg7[%100, %c0_32, %c0_33], %103 {strides = array<i32>} : memref<8x8x4xf32, #tpu.memory_space<vmem>>, vector<1x8x4xf32>,
    %c2_i32 = arith.constant 2 : i32
    %104 = arith.index_cast %c2_i32 : i32 to index
    %c0_34 = arith.constant 0 : index
    %c0_35 = arith.constant 0 : index
    %105 = vector.load %arg8[%104, %c0_34, %c0_35] : memref<8x8x16xf32, #tpu.memory_space<vmem>>, vector<1x8x16xf32>
    %106 = vector.shape_cast %105 : vector<1x8x16xf32> to vector<8x16xf32>
    %cst_36 = arith.constant dense<0.000000e+00> : vector<8x16xf32>
    %107 = tpu.matmul %99, %7, %cst_36 {dimension_numbers = #tpu.dot_dimension_numbers<[1], [0], [0], [1], [0, 0, 1, 1], [], []>} : vector<8x4xf32>, vector<4x16xf32>, vector<8x16xf32> -> vector<8x16xf32>
    %108 = arith.addf %106, %107 : vector<8x16xf32>
    %109 = arith.negf %108 : vector<8x16xf32>
    %110 = math.exp %109 : vector<8x16xf32>
    %cst_37 = arith.constant 1.000000e+00 : f32
    %111 = vector.broadcast %cst_37 : f32 to vector<8x16xf32>
    %112 = arith.addf %111, %110 : vector<8x16xf32>
    %113 = arith.divf %111, %112 : vector<8x16xf32>
    %114 = math.tanh %108 : vector<8x16xf32>
    %115 = vector.extract_strided_slice %113 {offsets = [0, 0], sizes = [8, 4], strides = [1, 1]} : vector<8x16xf32> to vector<8x4xf32>
    %116 = vector.extract_strided_slice %113 {offsets = [0, 4], sizes = [8, 4], strides = [1, 1]} : vector<8x16xf32> to vector<8x4xf32>
    %117 = vector.extract_strided_slice %114 {offsets = [0, 8], sizes = [8, 4], strides = [1, 1]} : vector<8x16xf32> to vector<8x4xf32>
    %118 = vector.extract_strided_slice %113 {offsets = [0, 12], sizes = [8, 4], strides = [1, 1]} : vector<8x16xf32> to vector<8x4xf32>
    %119 = arith.mulf %116, %97 : vector<8x4xf32>
    %120 = arith.mulf %115, %117 : vector<8x4xf32>
    %121 = arith.addf %119, %120 : vector<8x4xf32>
    %122 = math.tanh %121 : vector<8x4xf32>
    %123 = arith.mulf %118, %122 : vector<8x4xf32>
    %124 = arith.index_cast %c2_i32 : i32 to index
    %c0_38 = arith.constant 0 : index
    %c0_39 = arith.constant 0 : index
    %125 = vector.load %arg7[%124, %c0_38, %c0_39] : memref<8x8x4xf32, #tpu.memory_space<vmem>>, vector<1x8x4xf32>
    %126 = vector.shape_cast %125 : vector<1x8x4xf32> to vector<8x4xf32>
    %127 = vector.shape_cast %123 : vector<8x4xf32> to vector<1x8x4xf32>
    tpu.vector_store %arg7[%124, %c0_38, %c0_39], %127 {strides = array<i32>} : memref<8x8x4xf32, #tpu.memory_space<vmem>>, vector<1x8x4xf32>,
    %c3_i32 = arith.constant 3 : i32
    %128 = arith.index_cast %c3_i32 : i32 to index
    %c0_40 = arith.constant 0 : index
    %c0_41 = arith.constant 0 : index
    %129 = vector.load %arg8[%128, %c0_40, %c0_41] : memref<8x8x16xf32, #tpu.memory_space<vmem>>, vector<1x8x16xf32>
    %130 = vector.shape_cast %129 : vector<1x8x16xf32> to vector<8x16xf32>
    %cst_42 = arith.constant dense<0.000000e+00> : vector<8x16xf32>
    %131 = tpu.matmul %123, %7, %cst_42 {dimension_numbers = #tpu.dot_dimension_numbers<[1], [0], [0], [1], [0, 0, 1, 1], [], []>} : vector<8x4xf32>, vector<4x16xf32>, vector<8x16xf32> -> vector<8x16xf32>
    %132 = arith.addf %130, %131 : vector<8x16xf32>
    %133 = arith.negf %132 : vector<8x16xf32>
    %134 = math.exp %133 : vector<8x16xf32>
    %cst_43 = arith.constant 1.000000e+00 : f32
    %135 = vector.broadcast %cst_43 : f32 to vector<8x16xf32>
    %136 = arith.addf %135, %134 : vector<8x16xf32>
    %137 = arith.divf %135, %136 : vector<8x16xf32>
    %138 = math.tanh %132 : vector<8x16xf32>
    %139 = vector.extract_strided_slice %137 {offsets = [0, 0], sizes = [8, 4], strides = [1, 1]} : vector<8x16xf32> to vector<8x4xf32>
    %140 = vector.extract_strided_slice %137 {offsets = [0, 4], sizes = [8, 4], strides = [1, 1]} : vector<8x16xf32> to vector<8x4xf32>
    %141 = vector.extract_strided_slice %138 {offsets = [0, 8], sizes = [8, 4], strides = [1, 1]} : vector<8x16xf32> to vector<8x4xf32>
    %142 = vector.extract_strided_slice %137 {offsets = [0, 12], sizes = [8, 4], strides = [1, 1]} : vector<8x16xf32> to vector<8x4xf32>
    %143 = arith.mulf %140, %121 : vector<8x4xf32>
    %144 = arith.mulf %139, %141 : vector<8x4xf32>
    %145 = arith.addf %143, %144 : vector<8x4xf32>
    %146 = math.tanh %145 : vector<8x4xf32>
    %147 = arith.mulf %142, %146 : vector<8x4xf32>
    %148 = arith.index_cast %c3_i32 : i32 to index
    %c0_44 = arith.constant 0 : index
    %c0_45 = arith.constant 0 : index
    %149 = vector.load %arg7[%148, %c0_44, %c0_45] : memref<8x8x4xf32, #tpu.memory_space<vmem>>, vector<1x8x4xf32>
    %150 = vector.shape_cast %149 : vector<1x8x4xf32> to vector<8x4xf32>
    %151 = vector.shape_cast %147 : vector<8x4xf32> to vector<1x8x4xf32>
    tpu.vector_store %arg7[%148, %c0_44, %c0_45], %151 {strides = array<i32>} : memref<8x8x4xf32, #tpu.memory_space<vmem>>, vector<1x8x4xf32>,
    %c4_i32 = arith.constant 4 : i32
    %152 = arith.index_cast %c4_i32 : i32 to index
    %c0_46 = arith.constant 0 : index
    %c0_47 = arith.constant 0 : index
    %153 = vector.load %arg8[%152, %c0_46, %c0_47] : memref<8x8x16xf32, #tpu.memory_space<vmem>>, vector<1x8x16xf32>
    %154 = vector.shape_cast %153 : vector<1x8x16xf32> to vector<8x16xf32>
    %cst_48 = arith.constant dense<0.000000e+00> : vector<8x16xf32>
    %155 = tpu.matmul %147, %7, %cst_48 {dimension_numbers = #tpu.dot_dimension_numbers<[1], [0], [0], [1], [0, 0, 1, 1], [], []>} : vector<8x4xf32>, vector<4x16xf32>, vector<8x16xf32> -> vector<8x16xf32>
    %156 = arith.addf %154, %155 : vector<8x16xf32>
    %157 = arith.negf %156 : vector<8x16xf32>
    %158 = math.exp %157 : vector<8x16xf32>
    %cst_49 = arith.constant 1.000000e+00 : f32
    %159 = vector.broadcast %cst_49 : f32 to vector<8x16xf32>
    %160 = arith.addf %159, %158 : vector<8x16xf32>
    %161 = arith.divf %159, %160 : vector<8x16xf32>
    %162 = math.tanh %156 : vector<8x16xf32>
    %163 = vector.extract_strided_slice %161 {offsets = [0, 0], sizes = [8, 4], strides = [1, 1]} : vector<8x16xf32> to vector<8x4xf32>
    %164 = vector.extract_strided_slice %161 {offsets = [0, 4], sizes = [8, 4], strides = [1, 1]} : vector<8x16xf32> to vector<8x4xf32>
    %165 = vector.extract_strided_slice %162 {offsets = [0, 8], sizes = [8, 4], strides = [1, 1]} : vector<8x16xf32> to vector<8x4xf32>
    %166 = vector.extract_strided_slice %161 {offsets = [0, 12], sizes = [8, 4], strides = [1, 1]} : vector<8x16xf32> to vector<8x4xf32>
    %167 = arith.mulf %164, %145 : vector<8x4xf32>
    %168 = arith.mulf %163, %165 : vector<8x4xf32>
    %169 = arith.addf %167, %168 : vector<8x4xf32>
    %170 = math.tanh %169 : vector<8x4xf32>
    %171 = arith.mulf %166, %170 : vector<8x4xf32>
    %172 = arith.index_cast %c4_i32 : i32 to index
    %c0_50 = arith.constant 0 : index
    %c0_51 = arith.constant 0 : index
    %173 = vector.load %arg7[%172, %c0_50, %c0_51] : memref<8x8x4xf32, #tpu.memory_space<vmem>>, vector<1x8x4xf32>
    %174 = vector.shape_cast %173 : vector<1x8x4xf32> to vector<8x4xf32>
    %175 = vector.shape_cast %171 : vector<8x4xf32> to vector<1x8x4xf32>
    tpu.vector_store %arg7[%172, %c0_50, %c0_51], %175 {strides = array<i32>} : memref<8x8x4xf32, #tpu.memory_space<vmem>>, vector<1x8x4xf32>,
    %c5_i32 = arith.constant 5 : i32
    %176 = arith.index_cast %c5_i32 : i32 to index
    %c0_52 = arith.constant 0 : index
    %c0_53 = arith.constant 0 : index
    %177 = vector.load %arg8[%176, %c0_52, %c0_53] : memref<8x8x16xf32, #tpu.memory_space<vmem>>, vector<1x8x16xf32>
    %178 = vector.shape_cast %177 : vector<1x8x16xf32> to vector<8x16xf32>
    %cst_54 = arith.constant dense<0.000000e+00> : vector<8x16xf32>
    %179 = tpu.matmul %171, %7, %cst_54 {dimension_numbers = #tpu.dot_dimension_numbers<[1], [0], [0], [1], [0, 0, 1, 1], [], []>} : vector<8x4xf32>, vector<4x16xf32>, vector<8x16xf32> -> vector<8x16xf32>
    %180 = arith.addf %178, %179 : vector<8x16xf32>
    %181 = arith.negf %180 : vector<8x16xf32>
    %182 = math.exp %181 : vector<8x16xf32>
    %cst_55 = arith.constant 1.000000e+00 : f32
    %183 = vector.broadcast %cst_55 : f32 to vector<8x16xf32>
    %184 = arith.addf %183, %182 : vector<8x16xf32>
    %185 = arith.divf %183, %184 : vector<8x16xf32>
    %186 = math.tanh %180 : vector<8x16xf32>
    %187 = vector.extract_strided_slice %185 {offsets = [0, 0], sizes = [8, 4], strides = [1, 1]} : vector<8x16xf32> to vector<8x4xf32>
    %188 = vector.extract_strided_slice %185 {offsets = [0, 4], sizes = [8, 4], strides = [1, 1]} : vector<8x16xf32> to vector<8x4xf32>
    %189 = vector.extract_strided_slice %186 {offsets = [0, 8], sizes = [8, 4], strides = [1, 1]} : vector<8x16xf32> to vector<8x4xf32>
    %190 = vector.extract_strided_slice %185 {offsets = [0, 12], sizes = [8, 4], strides = [1, 1]} : vector<8x16xf32> to vector<8x4xf32>
    %191 = arith.mulf %188, %169 : vector<8x4xf32>
    %192 = arith.mulf %187, %189 : vector<8x4xf32>
    %193 = arith.addf %191, %192 : vector<8x4xf32>
    %194 = math.tanh %193 : vector<8x4xf32>
    %195 = arith.mulf %190, %194 : vector<8x4xf32>
    %196 = arith.index_cast %c5_i32 : i32 to index
    %c0_56 = arith.constant 0 : index
    %c0_57 = arith.constant 0 : index
    %197 = vector.load %arg7[%196, %c0_56, %c0_57] : memref<8x8x4xf32, #tpu.memory_space<vmem>>, vector<1x8x4xf32>
    %198 = vector.shape_cast %197 : vector<1x8x4xf32> to vector<8x4xf32>
    %199 = vector.shape_cast %195 : vector<8x4xf32> to vector<1x8x4xf32>
    tpu.vector_store %arg7[%196, %c0_56, %c0_57], %199 {strides = array<i32>} : memref<8x8x4xf32, #tpu.memory_space<vmem>>, vector<1x8x4xf32>,
    %c6_i32 = arith.constant 6 : i32
    %200 = arith.index_cast %c6_i32 : i32 to index
    %c0_58 = arith.constant 0 : index
    %c0_59 = arith.constant 0 : index
    %201 = vector.load %arg8[%200, %c0_58, %c0_59] : memref<8x8x16xf32, #tpu.memory_space<vmem>>, vector<1x8x16xf32>
    %202 = vector.shape_cast %201 : vector<1x8x16xf32> to vector<8x16xf32>
    %cst_60 = arith.constant dense<0.000000e+00> : vector<8x16xf32>
    %203 = tpu.matmul %195, %7, %cst_60 {dimension_numbers = #tpu.dot_dimension_numbers<[1], [0], [0], [1], [0, 0, 1, 1], [], []>} : vector<8x4xf32>, vector<4x16xf32>, vector<8x16xf32> -> vector<8x16xf32>
    %204 = arith.addf %202, %203 : vector<8x16xf32>
    %205 = arith.negf %204 : vector<8x16xf32>
    %206 = math.exp %205 : vector<8x16xf32>
    %cst_61 = arith.constant 1.000000e+00 : f32
    %207 = vector.broadcast %cst_61 : f32 to vector<8x16xf32>
    %208 = arith.addf %207, %206 : vector<8x16xf32>
    %209 = arith.divf %207, %208 : vector<8x16xf32>
    %210 = math.tanh %204 : vector<8x16xf32>
    %211 = vector.extract_strided_slice %209 {offsets = [0, 0], sizes = [8, 4], strides = [1, 1]} : vector<8x16xf32> to vector<8x4xf32>
    %212 = vector.extract_strided_slice %209 {offsets = [0, 4], sizes = [8, 4], strides = [1, 1]} : vector<8x16xf32> to vector<8x4xf32>
    %213 = vector.extract_strided_slice %210 {offsets = [0, 8], sizes = [8, 4], strides = [1, 1]} : vector<8x16xf32> to vector<8x4xf32>
    %214 = vector.extract_strided_slice %209 {offsets = [0, 12], sizes = [8, 4], strides = [1, 1]} : vector<8x16xf32> to vector<8x4xf32>
    %215 = arith.mulf %212, %193 : vector<8x4xf32>
    %216 = arith.mulf %211, %213 : vector<8x4xf32>
    %217 = arith.addf %215, %216 : vector<8x4xf32>
    %218 = math.tanh %217 : vector<8x4xf32>
    %219 = arith.mulf %214, %218 : vector<8x4xf32>
    %220 = arith.index_cast %c6_i32 : i32 to index
    %c0_62 = arith.constant 0 : index
    %c0_63 = arith.constant 0 : index
    %221 = vector.load %arg7[%220, %c0_62, %c0_63] : memref<8x8x4xf32, #tpu.memory_space<vmem>>, vector<1x8x4xf32>
    %222 = vector.shape_cast %221 : vector<1x8x4xf32> to vector<8x4xf32>
    %223 = vector.shape_cast %219 : vector<8x4xf32> to vector<1x8x4xf32>
    tpu.vector_store %arg7[%220, %c0_62, %c0_63], %223 {strides = array<i32>} : memref<8x8x4xf32, #tpu.memory_space<vmem>>, vector<1x8x4xf32>,
    %c7_i32 = arith.constant 7 : i32
    %224 = arith.index_cast %c7_i32 : i32 to index
    %c0_64 = arith.constant 0 : index
    %c0_65 = arith.constant 0 : index
    %225 = vector.load %arg8[%224, %c0_64, %c0_65] : memref<8x8x16xf32, #tpu.memory_space<vmem>>, vector<1x8x16xf32>
    %226 = vector.shape_cast %225 : vector<1x8x16xf32> to vector<8x16xf32>
    %cst_66 = arith.constant dense<0.000000e+00> : vector<8x16xf32>
    %227 = tpu.matmul %219, %7, %cst_66 {dimension_numbers = #tpu.dot_dimension_numbers<[1], [0], [0], [1], [0, 0, 1, 1], [], []>} : vector<8x4xf32>, vector<4x16xf32>, vector<8x16xf32> -> vector<8x16xf32>
    %228 = arith.addf %226, %227 : vector<8x16xf32>
    %229 = arith.negf %228 : vector<8x16xf32>
    %230 = math.exp %229 : vector<8x16xf32>
    %cst_67 = arith.constant 1.000000e+00 : f32
    %231 = vector.broadcast %cst_67 : f32 to vector<8x16xf32>
    %232 = arith.addf %231, %230 : vector<8x16xf32>
    %233 = arith.divf %231, %232 : vector<8x16xf32>
    %234 = math.tanh %228 : vector<8x16xf32>
    %235 = vector.extract_strided_slice %233 {offsets = [0, 0], sizes = [8, 4], strides = [1, 1]} : vector<8x16xf32> to vector<8x4xf32>
    %236 = vector.extract_strided_slice %233 {offsets = [0, 4], sizes = [8, 4], strides = [1, 1]} : vector<8x16xf32> to vector<8x4xf32>
    %237 = vector.extract_strided_slice %234 {offsets = [0, 8], sizes = [8, 4], strides = [1, 1]} : vector<8x16xf32> to vector<8x4xf32>
    %238 = vector.extract_strided_slice %233 {offsets = [0, 12], sizes = [8, 4], strides = [1, 1]} : vector<8x16xf32> to vector<8x4xf32>
    %239 = arith.mulf %236, %217 : vector<8x4xf32>
    %240 = arith.mulf %235, %237 : vector<8x4xf32>
    %241 = arith.addf %239, %240 : vector<8x4xf32>
    %242 = math.tanh %241 : vector<8x4xf32>
    %243 = arith.mulf %238, %242 : vector<8x4xf32>
    %244 = arith.index_cast %c7_i32 : i32 to index
    %c0_68 = arith.constant 0 : index
    %c0_69 = arith.constant 0 : index
    %245 = vector.load %arg7[%244, %c0_68, %c0_69] : memref<8x8x4xf32, #tpu.memory_space<vmem>>, vector<1x8x4xf32>
    %246 = vector.shape_cast %245 : vector<1x8x4xf32> to vector<8x4xf32>
    %247 = vector.shape_cast %243 : vector<8x4xf32> to vector<1x8x4xf32>
    tpu.vector_store %arg7[%244, %c0_68, %c0_69], %247 {strides = array<i32>} : memref<8x8x4xf32, #tpu.memory_space<vmem>>, vector<1x8x4xf32>,
    %c8_i32 = arith.constant 8 : i32
    %c0_70 = arith.constant 0 : index
    %c0_71 = arith.constant 0 : index
    %248 = vector.load %arg5[%c0_70, %c0_71] : memref<8x4xf32, #tpu.memory_space<vmem>>, vector<8x4xf32>
    tpu.vector_store %arg5[%c0_70, %c0_71], %243 {strides = array<i32>} : memref<8x4xf32, #tpu.memory_space<vmem>>, vector<8x4xf32>,
    %c0_72 = arith.constant 0 : index
    %c0_73 = arith.constant 0 : index
    %249 = vector.load %arg6[%c0_72, %c0_73] : memref<8x4xf32, #tpu.memory_space<vmem>>, vector<8x4xf32>
    tpu.vector_store %arg6[%c0_72, %c0_73], %241 {strides = array<i32>} : memref<8x4xf32, #tpu.memory_space<vmem>>, vector<8x4xf32>,
    %c0_74 = arith.constant 0 : index
    %c0_75 = arith.constant 0 : index
    %c0_76 = arith.constant 0 : index
    %250 = vector.load %arg7[%c0_74, %c0_75, %c0_76] : memref<8x8x4xf32, #tpu.memory_space<vmem>>, vector<8x8x4xf32>
    %cst_77 = arith.constant dense<0.000000e+00> : vector<8x4xf32>
    %251 = vector.multi_reduction <add>, %250, %cst_77 [1] : vector<8x8x4xf32> to vector<8x4xf32>
    %252 = vector.shape_cast %251 : vector<8x4xf32> to vector<8x1x4xf32>
    %cst_78 = arith.constant 8.000000e+00 : f32
    %253 = vector.broadcast %cst_78 : f32 to vector<8x1x4xf32>
    %254 = arith.divf %252, %253 : vector<8x1x4xf32>
    %255 = vector.broadcast %254 : vector<8x1x4xf32> to vector<8x8x4xf32>
    %256 = arith.subf %250, %255 : vector<8x8x4xf32>
    %257 = arith.mulf %256, %256 : vector<8x8x4xf32>
    %cst_79 = arith.constant dense<0.000000e+00> : vector<8x4xf32>
    %258 = vector.multi_reduction <add>, %257, %cst_79 [1] : vector<8x8x4xf32> to vector<8x4xf32>
    %259 = vector.shape_cast %258 : vector<8x4xf32> to vector<8x1x4xf32>
    %cst_80 = arith.constant 8.000000e+00 : f32
    %260 = vector.broadcast %cst_80 : f32 to vector<8x1x4xf32>
    %261 = arith.divf %259, %260 : vector<8x1x4xf32>
    %262 = vector.broadcast %254 : vector<8x1x4xf32> to vector<8x8x4xf32>
    %263 = arith.subf %250, %262 : vector<8x8x4xf32>
    %cst_81 = arith.constant 9.99999974E-6 : f32
    %264 = vector.broadcast %cst_81 : f32 to vector<8x1x4xf32>
    %265 = arith.addf %261, %264 : vector<8x1x4xf32>
    %266 = math.rsqrt %265 : vector<8x1x4xf32>
    %267 = vector.broadcast %266 : vector<8x1x4xf32> to vector<8x8x4xf32>
    %268 = arith.mulf %263, %267 : vector<8x8x4xf32>
    %269 = vector.shape_cast %14 : vector<1x4xf32> to vector<1x1x4xf32>
    %270 = vector.broadcast %269 : vector<1x1x4xf32> to vector<8x8x4xf32>
    %271 = arith.mulf %268, %270 : vector<8x8x4xf32>
    %272 = vector.shape_cast %15 : vector<1x4xf32> to vector<1x1x4xf32>
    %273 = vector.broadcast %272 : vector<1x1x4xf32> to vector<8x8x4xf32>
    %274 = arith.addf %271, %273 : vector<8x8x4xf32>
    %275 = vector.shape_cast %274 : vector<8x8x4xf32> to vector<64x4xf32>
    %cst_82 = arith.constant dense<0.000000e+00> : vector<8x64xf32>
    %276 = tpu.matmul %8, %275, %cst_82 {dimension_numbers = #tpu.dot_dimension_numbers<[1], [1], [0], [0], [0, 0, 1, 0], [], []>} : vector<8x4xf32>, vector<64x4xf32>, vector<8x64xf32> -> vector<8x64xf32>
    %277 = vector.broadcast %9 : vector<8x1xf32> to vector<8x64xf32>
    %278 = arith.addf %276, %277 : vector<8x64xf32>
    %c0_83 = arith.constant 0 : index
    %c0_84 = arith.constant 0 : index
    %279 = vector.load %arg4[%c0_83, %c0_84] : memref<8x64xf32, #tpu.memory_space<vmem>>, vector<8x64xf32>
    tpu.vector_store %arg4[%c0_83, %c0_84], %278 {strides = array<i32>} : memref<8x64xf32, #tpu.memory_space<vmem>>, vector<8x64xf32>,
    return
  }
  func.func @transform_0(%arg0: i32) -> (i32, i32, i32) {
    %c0_i32 = arith.constant 0 : i32
    %c0_i32_0 = arith.constant 0 : i32
    %c0_i32_1 = arith.constant 0 : i32
    return %arg0, %c0_i32, %c0_i32_0 : i32, i32, i32
  }
  func.func @transform_1(%arg0: i32) -> (i32, i32) {
    %c0_i32 = arith.constant 0 : i32
    %c0_i32_0 = arith.constant 0 : i32
    %c0_i32_1 = arith.constant 0 : i32
    return %c0_i32, %c0_i32_0 : i32, i32
  }
  func.func @transform_2(%arg0: i32) -> (i32, i32) {
    %c0_i32 = arith.constant 0 : i32
    %c0_i32_0 = arith.constant 0 : i32
    %c0_i32_1 = arith.constant 0 : i32
    return %c0_i32, %c0_i32_0 : i32, i32
  }
  func.func @transform_3(%arg0: i32) -> (i32, i32) {
    %c0_i32 = arith.constant 0 : i32
    %c0_i32_0 = arith.constant 0 : i32
    return %c0_i32, %arg0 : i32, i32
  }
}

</mosaic_0001>

<llo_original>
// kernel: flow_prediction_forward.1
$region0: #{flow_prediction_forward.1}
  #allocation0 [shape = 'u32[]', space=smem, size = 0x4, offset = 0x4, fixed_abs, tag = 'smem constant byte address 0x4 - core index']
  #allocation1 [shape = 'u32[72,128]{1,0:T(1,128)}', space=vmem, size = 0x9000, scoped, tag = 'internal scratch']
  #allocation2 [shape = 'f32[8,4]{1,0:T(8,128)}', space=vmem, size = 0x1000, scoped, tag = 'scratch operand']
  #allocation3 [shape = 'f32[8,4]{1,0:T(8,128)}', space=vmem, size = 0x1000, scoped, tag = 'scratch operand']
  #allocation4 [shape = 'f32[8,8,4]{2,1,0:T(8,128)}', space=vmem, size = 0x8000, scoped, tag = 'scratch operand']
  #allocation5 [shape = 'f32[8,8,16]{2,1,0:T(8,128)}', space=vmem, size = 0x8000, scoped, tag = 'scratch operand']
  %s0 = inlined_call_operand.vmem [shape: f32[8,8,12], index: 0, kind: input, shape index: {}]
  %s1 = inlined_call_operand.vmem [shape: f32[40,16], index: 1, kind: input, shape index: {}]
  %s2 = inlined_call_operand.vmem [shape: f32[8,16], index: 2, kind: input, shape index: {}]
  %s3 = inlined_call_operand.vmem [shape: f32[8,64], index: 3, kind: output, shape index: {}]
  %s4 = sld [smem:[#allocation0]]
  $region26: #{flow_prediction_forward.1} parent=0
    _
  %s6 = ssub.s32 1, %s4
  %s7 = scalar_select 0, %s6, %s4
  // Predicated region
  $region2: #{flow_prediction_forward.1} parent=0 // pred_check
    _
  $region3: #{flow_prediction_forward.1} parent=0 // pred_check_branch
    %9 = sbr.rel (0) target = $region5
  $region4: #{flow_prediction_forward.1} parent=0 // pred_region
    _
  $region5: #{flow_prediction_forward.1} parent=0 // pred_fallthru
    _
  // Predicated region
  $region6: #{flow_prediction_forward.1} parent=0 // pred_check
    _
  $region7: #{flow_prediction_forward.1} parent=0 // pred_check_branch
    %11 = sbr.rel (0) target = $region9
  $region8: #{flow_prediction_forward.1} parent=0 // pred_region
    _
  $region9: #{flow_prediction_forward.1} parent=0 // pred_fallthru
    _
  // Predicated region
  $region10: #{flow_prediction_forward.1} parent=0 // pred_check
    _
  $region11: #{flow_prediction_forward.1} parent=0 // pred_check_branch
    %13 = sbr.rel (0) target = $region13
  $region12: #{flow_prediction_forward.1} parent=0 // pred_region
    _
  $region13: #{flow_prediction_forward.1} parent=0 // pred_fallthru
    _
  %p14 = scmp.eq.s32.totalorder 0, 0
  // Predicated region
  $region14: #{flow_prediction_forward.1} parent=0 // pred_check
    %p15 = pneg %p14
  $region15: #{flow_prediction_forward.1} parent=0 // pred_check_branch
    %17 = sbr.rel (%p15) target = $region17
  $region16: #{flow_prediction_forward.1} parent=0 // pred_region
    %vm18 = vcmask 31744
    %19 = vst.msk [vmem:[#allocation2] sm:$0xff] %vm18, 0.0
    %20 = vst.msk [vmem:[#allocation3] sm:$0xff] %vm18, 0.0
  $region17: #{flow_prediction_forward.1} parent=0 // pred_fallthru
    _
  %v21 = vld [vmem:[%s1] sm:$0xff]
  %v22 = vld [vmem:[%s1 + $0x8] sm:$0xff]
  %v23 = vld [vmem:[%s1 + $0x10] sm:$0xff]
  %v24 = vld [vmem:[%s1 + $0x18] sm:$0xff]
  %v25 = vld [vmem:[%s1 + $0x20] sm:$0xff]
  %v26 = vld [vmem:[%s2] sm:$0xff]
  %v27 = vld [vmem:[%s0] sm:$0xff]
  %v28 = vld [vmem:[%s0 + $0x8] sm:$0xff]
  %v29 = vld [vmem:[%s0 + $0x10] sm:$0xff]
  %v30 = vld [vmem:[%s0 + $0x18] sm:$0xff]
  %v31 = vld [vmem:[%s0 + $0x20] sm:$0xff]
  %v32 = vld [vmem:[%s0 + $0x28] sm:$0xff]
  %v33 = vld [vmem:[%s0 + $0x30] sm:$0xff]
  %v34 = vld [vmem:[%s0 + $0x38] sm:$0xff]
  %v35 = vperm.slane %v26, 0
  %vm36 = vcmask 97280
  %v38 = vsel %vm36, %v27, 0
  %v41 = vsel %vm36, %v28, 0
  %v44 = vsel %vm36, %v29, 0
  %v47 = vsel %vm36, %v30, 0
  %v50 = vsel %vm36, %v31, 0
  %v53 = vsel %vm36, %v32, 0
  %v56 = vsel %vm36, %v33, 0
  %v59 = vsel %vm36, %v34, 0
  %vm61 = vcmask 1043456
  %v63 = vsel %vm61, %v22, 0
  %65 = vmatpush.msra.mxu0 0.0
  %66 = vmatpush.msra.mxu0 0.0
  %67 = vmatpush.msra.mxu0 0.0
  %68 = vmatpush.msra.mxu0 0.0
  %69 = vmatpush.msra.mxu0 0.0
  %70 = vmatpush.msra.mxu0 0.0
  %71 = vmatpush.msra.mxu0 0.0
  %72 = vmatpush.msra.mxu0 0.0
  %73 = vmatpush.msra.mxu0 0.0
  %74 = vmatpush.msra.mxu0 0.0
  %75 = vmatpush.msra.mxu0 0.0
  %76 = vmatpush.msra.mxu0 0.0
  %77 = vmatpush.msra.mxu0 0.0
  %78 = vmatpush.msra.mxu0 0.0
  %79 = vmatpush.msra.mxu0 %v63
  %80 = vmatpush.msra.mxu0 %v21
  %81 = vmatmul.f32.gmra.mxu0 %v38
  %v82 = vpop.f32.mrf.mxu0
  %v83 = vadd.f32 %v35, %v82
  %84 = vmatmul.f32.gmra.mxu0 %v41
  %v85 = vpop.f32.mrf.mxu0
  %v86 = vadd.f32 %v35, %v85
  %87 = vmatmul.f32.gmra.mxu0 %v44
  %v88 = vpop.f32.mrf.mxu0
  %v89 = vadd.f32 %v35, %v88
  %90 = vmatmul.f32.gmra.mxu0 %v47
  %v91 = vpop.f32.mrf.mxu0
  %v92 = vadd.f32 %v35, %v91
  %93 = vmatmul.f32.gmra.mxu0 %v50
  %v94 = vpop.f32.mrf.mxu0
  %v95 = vadd.f32 %v35, %v94
  %96 = vmatmul.f32.gmra.mxu0 %v53
  %v97 = vpop.f32.mrf.mxu0
  %v98 = vadd.f32 %v35, %v97
  %99 = vmatmul.f32.gmra.mxu0 %v56
  %v100 = vpop.f32.mrf.mxu0
  %v101 = vadd.f32 %v35, %v100
  %102 = vmatmul.f32.gmra.mxu0 %v59
  %v103 = vpop.f32.mrf.mxu0
  %v104 = vadd.f32 %v35, %v103
  %105 = vdwg.mxu0
  %vm106 = vcmask 31744
  %v107 = vsel %vm106, %v83, 0.0
  %v108 = vrot.slane %v107, 4
  %v109 = vadd.f32 %v107, %v108
  %v110 = vrot.slane %v109, 2
  %v111 = vadd.f32 %v109, %v110
  %v112 = vrot.slane %v111, 1
  %v113 = vadd.f32 %v111, %v112
  %v114 = vsel %vm106, %v86, 0.0
  %v115 = vrot.slane %v114, 4
  %v116 = vadd.f32 %v114, %v115
  %v117 = vrot.slane %v116, 2
  %v118 = vadd.f32 %v116, %v117
  %v119 = vrot.slane %v118, 1
  %v120 = vadd.f32 %v118, %v119
  %v121 = vsel %vm106, %v89, 0.0
  %v122 = vrot.slane %v121, 4
  %v123 = vadd.f32 %v121, %v122
  %v124 = vrot.slane %v123, 2
  %v125 = vadd.f32 %v123, %v124
  %v126 = vrot.slane %v125, 1
  %v127 = vadd.f32 %v125, %v126
  %v128 = vsel %vm106, %v92, 0.0
  %v129 = vrot.slane %v128, 4
  %v130 = vadd.f32 %v128, %v129
  %v131 = vrot.slane %v130, 2
  %v132 = vadd.f32 %v130, %v131
  %v133 = vrot.slane %v132, 1
  %v134 = vadd.f32 %v132, %v133
  %v135 = vsel %vm106, %v95, 0.0
  %v136 = vrot.slane %v135, 4
  %v137 = vadd.f32 %v135, %v136
  %v138 = vrot.slane %v137, 2
  %v139 = vadd.f32 %v137, %v138
  %v140 = vrot.slane %v139, 1
  %v141 = vadd.f32 %v139, %v140
  %v142 = vsel %vm106, %v98, 0.0
  %v143 = vrot.slane %v142, 4
  %v144 = vadd.f32 %v142, %v143
  %v145 = vrot.slane %v144, 2
  %v146 = vadd.f32 %v144, %v145
  %v147 = vrot.slane %v146, 1
  %v148 = vadd.f32 %v146, %v147
  %v149 = vsel %vm106, %v101, 0.0
  %v150 = vrot.slane %v149, 4
  %v151 = vadd.f32 %v149, %v150
  %v152 = vrot.slane %v151, 2
  %v153 = vadd.f32 %v151, %v152
  %v154 = vrot.slane %v153, 1
  %v155 = vadd.f32 %v153, %v154
  %v156 = vsel %vm106, %v104, 0.0
  %v157 = vrot.slane %v156, 4
  %v158 = vadd.f32 %v156, %v157
  %v159 = vrot.slane %v158, 2
  %v160 = vadd.f32 %v158, %v159
  %v161 = vrot.slane %v160, 1
  %v162 = vadd.f32 %v160, %v161
  %v163 = vrcp.pop 8.0
  %v164 = vmul.f32 8.0, %v163
  %v165 = vsub.f32 1.0, %v164
  %v166 = vmul.f32 %v163, %v165
  %v167 = vadd.f32 %v163, %v166
  %vm168 = vweird.f32 %v163
  %v169 = vsel %vm168, %v163, %v167
  %v170 = vmul.f32 %v113, %v169
  %v171 = vmul.f32 %v120, %v169
  %v172 = vmul.f32 %v127, %v169
  %v173 = vmul.f32 %v134, %v169
  %v174 = vmul.f32 %v141, %v169
  %v175 = vmul.f32 %v148, %v169
  %v176 = vmul.f32 %v155, %v169
  %v177 = vmul.f32 %v162, %v169
  %v178 = vsub.f32 %v83, %v170
  %v179 = vsub.f32 %v86, %v171
  %v180 = vsub.f32 %v89, %v172
  %v181 = vsub.f32 %v92, %v173
  %v182 = vsub.f32 %v95, %v174
  %v183 = vsub.f32 %v98, %v175
  %v184 = vsub.f32 %v101, %v176
  %v185 = vsub.f32 %v104, %v177
  %v186 = vmul.f32 %v178, %v178
  %v187 = vmul.f32 %v179, %v179
  %v188 = vmul.f32 %v180, %v180
  %v189 = vmul.f32 %v181, %v181
  %v190 = vmul.f32 %v182, %v182
  %v191 = vmul.f32 %v183, %v183
  %v192 = vmul.f32 %v184, %v184
  %v193 = vmul.f32 %v185, %v185
  %v194 = vsel %vm106, %v186, 0.0
  %v195 = vrot.slane %v194, 4
  %v196 = vadd.f32 %v194, %v195
  %v197 = vrot.slane %v196, 2
  %v198 = vadd.f32 %v196, %v197
  %v199 = vrot.slane %v198, 1
  %v200 = vadd.f32 %v198, %v199
  %v201 = vsel %vm106, %v187, 0.0
  %v202 = vrot.slane %v201, 4
  %v203 = vadd.f32 %v201, %v202
  %v204 = vrot.slane %v203, 2
  %v205 = vadd.f32 %v203, %v204
  %v206 = vrot.slane %v205, 1
  %v207 = vadd.f32 %v205, %v206
  %v208 = vsel %vm106, %v188, 0.0
  %v209 = vrot.slane %v208, 4
  %v210 = vadd.f32 %v208, %v209
  %v211 = vrot.slane %v210, 2
  %v212 = vadd.f32 %v210, %v211
  %v213 = vrot.slane %v212, 1
  %v214 = vadd.f32 %v212, %v213
  %v215 = vsel %vm106, %v189, 0.0
  %v216 = vrot.slane %v215, 4
  %v217 = vadd.f32 %v215, %v216
  %v218 = vrot.slane %v217, 2
  %v219 = vadd.f32 %v217, %v218
  %v220 = vrot.slane %v219, 1
  %v221 = vadd.f32 %v219, %v220
  %v222 = vsel %vm106, %v190, 0.0
  %v223 = vrot.slane %v222, 4
  %v224 = vadd.f32 %v222, %v223
  %v225 = vrot.slane %v224, 2
  %v226 = vadd.f32 %v224, %v225
  %v227 = vrot.slane %v226, 1
  %v228 = vadd.f32 %v226, %v227
  %v229 = vsel %vm106, %v191, 0.0
  %v230 = vrot.slane %v229, 4
  %v231 = vadd.f32 %v229, %v230
  %v232 = vrot.slane %v231, 2
  %v233 = vadd.f32 %v231, %v232
  %v234 = vrot.slane %v233, 1
  %v235 = vadd.f32 %v233, %v234
  %v236 = vsel %vm106, %v192, 0.0
  %v237 = vrot.slane %v236, 4
  %v238 = vadd.f32 %v236, %v237
  %v239 = vrot.slane %v238, 2
  %v240 = vadd.f32 %v238, %v239
  %v241 = vrot.slane %v240, 1
  %v242 = vadd.f32 %v240, %v241
  %v243 = vsel %vm106, %v193, 0.0
  %v244 = vrot.slane %v243, 4
  %v245 = vadd.f32 %v243, %v244
  %v246 = vrot.slane %v245, 2
  %v247 = vadd.f32 %v245, %v246
  %v248 = vrot.slane %v247, 1
  %v249 = vadd.f32 %v247, %v248
  %v250 = vmul.f32 %v200, %v169
  %v251 = vmul.f32 %v207, %v169
  %v252 = vmul.f32 %v214, %v169
  %v253 = vmul.f32 %v221, %v169
  %v254 = vmul.f32 %v228, %v169
  %v255 = vmul.f32 %v235, %v169
  %v256 = vmul.f32 %v242, %v169
  %v257 = vmul.f32 %v249, %v169
  %v258 = vadd.f32 %v250, 1e-05
  %v259 = vadd.f32 %v251, 1e-05
  %v260 = vadd.f32 %v252, 1e-05
  %v261 = vadd.f32 %v253, 1e-05
  %v262 = vadd.f32 %v254, 1e-05
  %v263 = vadd.f32 %v255, 1e-05
  %v264 = vadd.f32 %v256, 1e-05
  %v265 = vadd.f32 %v257, 1e-05
  %v266 = vrsqrt.pop %v258
  %v267 = vmul.f32 %v266, %v258
  %v268 = vmul.f32 %v267, %v266
  %v269 = vmul.f32 0.5, %v268
  %v270 = vsub.f32 1.5, %v269
  %v271 = vmul.f32 %v266, %v270
  %vm272 = vweird.f32 %v258
  %vm273 = vweird.f32 %v266
  %vm274 = vmor %vm272, %vm273
  %v275 = vsel %vm274, %v266, %v271
  %v276 = vrsqrt.pop %v259
  %v277 = vmul.f32 %v276, %v259
  %v278 = vmul.f32 %v277, %v276
  %v279 = vmul.f32 0.5, %v278
  %v280 = vsub.f32 1.5, %v279
  %v281 = vmul.f32 %v276, %v280
  %vm282 = vweird.f32 %v259
  %vm283 = vweird.f32 %v276
  %vm284 = vmor %vm282, %vm283
  %v285 = vsel %vm284, %v276, %v281
  %v286 = vrsqrt.pop %v260
  %v287 = vmul.f32 %v286, %v260
  %v288 = vmul.f32 %v287, %v286
  %v289 = vmul.f32 0.5, %v288
  %v290 = vsub.f32 1.5, %v289
  %v291 = vmul.f32 %v286, %v290
  %vm292 = vweird.f32 %v260
  %vm293 = vweird.f32 %v286
  %vm294 = vmor %vm292, %vm293
  %v295 = vsel %vm294, %v286, %v291
  %v296 = vrsqrt.pop %v261
  %v297 = vmul.f32 %v296, %v261
  %v298 = vmul.f32 %v297, %v296
  %v299 = vmul.f32 0.5, %v298
  %v300 = vsub.f32 1.5, %v299
  %v301 = vmul.f32 %v296, %v300
  %vm302 = vweird.f32 %v261
  %vm303 = vweird.f32 %v296
  %vm304 = vmor %vm302, %vm303
  %v305 = vsel %vm304, %v296, %v301
  %v306 = vrsqrt.pop %v262
  %v307 = vmul.f32 %v306, %v262
  %v308 = vmul.f32 %v307, %v306
  %v309 = vmul.f32 0.5, %v308
  %v310 = vsub.f32 1.5, %v309
  %v311 = vmul.f32 %v306, %v310
  %vm312 = vweird.f32 %v262
  %vm313 = vweird.f32 %v306
  %vm314 = vmor %vm312, %vm313
  %v315 = vsel %vm314, %v306, %v311
  %v316 = vrsqrt.pop %v263
  %v317 = vmul.f32 %v316, %v263
  %v318 = vmul.f32 %v317, %v316
  %v319 = vmul.f32 0.5, %v318
  %v320 = vsub.f32 1.5, %v319
  %v321 = vmul.f32 %v316, %v320
  %vm322 = vweird.f32 %v263
  %vm323 = vweird.f32 %v316
  %vm324 = vmor %vm322, %vm323
  %v325 = vsel %vm324, %v316, %v321
  %v326 = vrsqrt.pop %v264
  %v327 = vmul.f32 %v326, %v264
  %v328 = vmul.f32 %v327, %v326
  %v329 = vmul.f32 0.5, %v328
  %v330 = vsub.f32 1.5, %v329
  %v331 = vmul.f32 %v326, %v330
  %vm332 = vweird.f32 %v264
  %vm333 = vweird.f32 %v326
  %vm334 = vmor %vm332, %vm333
  %v335 = vsel %vm334, %v326, %v331
  %v336 = vrsqrt.pop %v265
  %v337 = vmul.f32 %v336, %v265
  %v338 = vmul.f32 %v337, %v336
  %v339 = vmul.f32 0.5, %v338
  %v340 = vsub.f32 1.5, %v339
  %v341 = vmul.f32 %v336, %v340
  %vm342 = vweird.f32 %v265
  %vm343 = vweird.f32 %v336
  %vm344 = vmor %vm342, %vm343
  %v345 = vsel %vm344, %v336, %v341
  %v346 = vmul.f32 %v178, %v275
  %v347 = vmul.f32 %v179, %v285
  %v348 = vmul.f32 %v180, %v295
  %v349 = vmul.f32 %v181, %v305
  %v350 = vmul.f32 %v182, %v315
  %v351 = vmul.f32 %v183, %v325
  %v352 = vmul.f32 %v184, %v335
  %v353 = vmul.f32 %v185, %v345
  %v354 = vperm.slane %v26, 1
  %v355 = vmul.f32 %v346, %v354
  %v356 = vmul.f32 %v347, %v354
  %v357 = vmul.f32 %v348, %v354
  %v358 = vmul.f32 %v349, %v354
  %v359 = vmul.f32 %v350, %v354
  %v360 = vmul.f32 %v351, %v354
  %v361 = vmul.f32 %v352, %v354
  %v362 = vmul.f32 %v353, %v354
  %v363 = vperm.slane %v26, 2
  %v364 = vadd.f32 %v355, %v363
  %v365 = vadd.f32 %v356, %v363
  %v366 = vadd.f32 %v357, %v363
  %v367 = vadd.f32 %v358, %v363
  %v368 = vadd.f32 %v359, %v363
  %v369 = vadd.f32 %v360, %v363
  %v370 = vadd.f32 %v361, %v363
  %v371 = vadd.f32 %v362, %v363
  %v372 = vmax.f32 %v364, 0.0
  %v373 = vmax.f32 %v365, 0.0
  %v374 = vmax.f32 %v366, 0.0
  %v375 = vmax.f32 %v367, 0.0
  %v376 = vmax.f32 %v368, 0.0
  %v377 = vmax.f32 %v369, 0.0
  %v378 = vmax.f32 %v370, 0.0
  %v379 = vmax.f32 %v371, 0.0
  %v380 = vperm.slane %v26, 3
  %v382 = vsel %vm106, %v372, 0
  %v385 = vsel %vm106, %v373, 0
  %v388 = vsel %vm106, %v374, 0
  %v391 = vsel %vm106, %v375, 0
  %v394 = vsel %vm106, %v376, 0
  %v397 = vsel %vm106, %v377, 0
  %v400 = vsel %vm106, %v378, 0
  %v403 = vsel %vm106, %v379, 0
  %v406 = vsel %vm61, %v23, 0
  %408 = vmatpush.msra.mxu0 0.0
  %409 = vmatpush.msra.mxu0 0.0
  %410 = vmatpush.msra.mxu0 0.0
  %411 = vmatpush.msra.mxu0 0.0
  %412 = vmatpush.msra.mxu0 0.0
  %413 = vmatpush.msra.mxu0 0.0
  %414 = vmatpush.msra.mxu0 0.0
  %415 = vmatpush.msra.mxu0 0.0
  %416 = vmatpush.msra.mxu0 0.0
  %417 = vmatpush.msra.mxu0 0.0
  %418 = vmatpush.msra.mxu0 0.0
  %419 = vmatpush.msra.mxu0 0.0
  %420 = vmatpush.msra.mxu0 0.0
  %421 = vmatpush.msra.mxu0 0.0
  %422 = vmatpush.msra.mxu0 0.0
  %423 = vmatpush.msra.mxu0 %v406
  %424 = vmatmul.f32.gmra.mxu0 %v382
  %v425 = vpop.f32.mrf.mxu0
  %v426 = vadd.f32 %v380, %v425
  %427 = vmatmul.f32.gmra.mxu0 %v385
  %v428 = vpop.f32.mrf.mxu0
  %v429 = vadd.f32 %v380, %v428
  %430 = vmatmul.f32.gmra.mxu0 %v388
  %v431 = vpop.f32.mrf.mxu0
  %v432 = vadd.f32 %v380, %v431
  %433 = vmatmul.f32.gmra.mxu0 %v391
  %v434 = vpop.f32.mrf.mxu0
  %v435 = vadd.f32 %v380, %v434
  %436 = vmatmul.f32.gmra.mxu0 %v394
  %v437 = vpop.f32.mrf.mxu0
  %v438 = vadd.f32 %v380, %v437
  %439 = vmatmul.f32.gmra.mxu0 %v397
  %v440 = vpop.f32.mrf.mxu0
  %v441 = vadd.f32 %v380, %v440
  %442 = vmatmul.f32.gmra.mxu0 %v400
  %v443 = vpop.f32.mrf.mxu0
  %v444 = vadd.f32 %v380, %v443
  %445 = vmatmul.f32.gmra.mxu0 %v403
  %v446 = vpop.f32.mrf.mxu0
  %v447 = vadd.f32 %v380, %v446
  %448 = vdwg.mxu0
  %vm449 = vcmask 130048
  %450 = vst.msk [vmem:[#allocation5] sm:$0xff] %vm449, %v426
  %451 = vst.msk [vmem:[#allocation5 + $0x8] sm:$0xff] %vm449, %v429
  %452 = vst.msk [vmem:[#allocation5 + $0x10] sm:$0xff] %vm449, %v432
  %453 = vst.msk [vmem:[#allocation5 + $0x18] sm:$0xff] %vm449, %v435
  %454 = vst.msk [vmem:[#allocation5 + $0x20] sm:$0xff] %vm449, %v438
  %455 = vst.msk [vmem:[#allocation5 + $0x28] sm:$0xff] %vm449, %v441
  %456 = vst.msk [vmem:[#allocation5 + $0x30] sm:$0xff] %vm449, %v444
  %457 = vst.msk [vmem:[#allocation5 + $0x38] sm:$0xff] %vm449, %v447
  %v458 = vld [vmem:[#allocation2] sm:$0xff]
  %v459 = vld [vmem:[#allocation3] sm:$0xff]
  %v460 = vld [vmem:[#allocation5] sm:$0xff]
  %v462 = vsel %vm106, %v458, 0
  %v465 = vsel %vm61, %v24, 0
  %467 = vmatpush.msra.mxu0 0.0
  %468 = vmatpush.msra.mxu0 0.0
  %469 = vmatpush.msra.mxu0 0.0
  %470 = vmatpush.msra.mxu0 0.0
  %471 = vmatpush.msra.mxu0 0.0
  %472 = vmatpush.msra.mxu0 0.0
  %473 = vmatpush.msra.mxu0 0.0
  %474 = vmatpush.msra.mxu0 0.0
  %475 = vmatpush.msra.mxu0 0.0
  %476 = vmatpush.msra.mxu0 0.0
  %477 = vmatpush.msra.mxu0 0.0
  %478 = vmatpush.msra.mxu0 0.0
  %479 = vmatpush.msra.mxu0 0.0
  %480 = vmatpush.msra.mxu0 0.0
  %481 = vmatpush.msra.mxu0 0.0
  %482 = vmatpush.msra.mxu0 %v465
  %483 = vmatmul.f32.gmra.mxu0 %v462
  %v484 = vpop.f32.mrf.mxu0
  %v485 = vadd.f32 0.0, %v484
  %486 = vdwg.mxu0
  %v487 = vadd.f32 %v460, %v485
  %v488 = vxor.u32 %v487, 2147483648
  %v489 = vmul.f32 %v488, 1.442695
  %v490 = vpow.pop %v489
  %v491 = vadd.f32 %v490, 1.0
  %v492 = vrcp.pop %v491
  %v493 = vmul.f32 %v491, %v492
  %v494 = vsub.f32 1.0, %v493
  %v495 = vmul.f32 %v492, %v494
  %v496 = vadd.f32 %v492, %v495
  %vm497 = vweird.f32 %v491
  %vm498 = vweird.f32 %v492
  %vm499 = vmor %vm497, %vm498
  %v500 = vsel %vm499, %v492, %v496
  %v501 = vand.u32 2147483647, %v491
  %vm502 = vcmp.eq.f32.partialorder %v501, 8.507059e+37
  %v503 = vand.u32 %v491, 2147483648
  %v504 = vor.u32 1.1754944e-38, %v503
  %v505 = vsel %vm502, %v504, %v500
  %v506 = vmul.f32 1.0, %v505
  %v507 = vtanh.pop %v487
  %509 = vrot.lane.b32.xlu0 %v459, 4
  %v510 = vpop.permute.xlu0 %509
  %v512 = vmul.f32 %v506, %v510
  %514 = vrot.lane.b32.xlu0 %v507, 120
  %v515 = vpop.permute.xlu0 %514
  %v517 = vmul.f32 %v506, %v515
  %519 = vrot.lane.b32.xlu0 %v517, 4
  %v520 = vpop.permute.xlu0 %519
  %v522 = vadd.f32 %v512, %v520
  %v523 = vtanh.pop %v522
  %525 = vrot.lane.b32.xlu0 %v523, 8
  %v526 = vpop.permute.xlu0 %525
  %v528 = vmul.f32 %v506, %v526
  %530 = vrot.lane.b32.xlu0 %v528, 116
  %v531 = vpop.permute.xlu0 %530
  %533 = vst.msk [vmem:[#allocation4] sm:$0xff] %vm106, %v531
  %s534 = scalar_lea.vmem [#allocation5], 8
  %v535 = vld [vmem:[%s534] sm:$0xff]
  %v536 = vsel %vm106, %v531, 0
  %538 = vmatpush.msra.mxu0 0.0
  %539 = vmatpush.msra.mxu0 0.0
  %540 = vmatpush.msra.mxu0 0.0
  %541 = vmatpush.msra.mxu0 0.0
  %542 = vmatpush.msra.mxu0 0.0
  %543 = vmatpush.msra.mxu0 0.0
  %544 = vmatpush.msra.mxu0 0.0
  %545 = vmatpush.msra.mxu0 0.0
  %546 = vmatpush.msra.mxu0 0.0
  %547 = vmatpush.msra.mxu0 0.0
  %548 = vmatpush.msra.mxu0 0.0
  %549 = vmatpush.msra.mxu0 0.0
  %550 = vmatpush.msra.mxu0 0.0
  %551 = vmatpush.msra.mxu0 0.0
  %552 = vmatpush.msra.mxu0 0.0
  %553 = vmatpush.msra.mxu0 %v465
  %554 = vmatmul.f32.gmra.mxu0 %v536
  %v555 = vpop.f32.mrf.mxu0
  %v556 = vadd.f32 0.0, %v555
  %557 = vdwg.mxu0
  %v558 = vadd.f32 %v535, %v556
  %v559 = vxor.u32 %v558, 2147483648
  %v560 = vmul.f32 %v559, 1.442695
  %v561 = vpow.pop %v560
  %v562 = vadd.f32 %v561, 1.0
  %v563 = vrcp.pop %v562
  %v564 = vmul.f32 %v562, %v563
  %v565 = vsub.f32 1.0, %v564
  %v566 = vmul.f32 %v563, %v565
  %v567 = vadd.f32 %v563, %v566
  %vm568 = vweird.f32 %v562
  %vm569 = vweird.f32 %v563
  %vm570 = vmor %vm568, %vm569
  %v571 = vsel %vm570, %v563, %v567
  %v572 = vand.u32 2147483647, %v562
  %vm573 = vcmp.eq.f32.partialorder %v572, 8.507059e+37
  %v574 = vand.u32 %v562, 2147483648
  %v575 = vor.u32 1.1754944e-38, %v574
  %v576 = vsel %vm573, %v575, %v571
  %v577 = vmul.f32 1.0, %v576
  %v578 = vtanh.pop %v558
  %v579 = vmul.f32 %v577, %v522
  %581 = vrot.lane.b32.xlu0 %v578, 120
  %v582 = vpop.permute.xlu0 %581
  %v584 = vmul.f32 %v577, %v582
  %586 = vrot.lane.b32.xlu0 %v584, 4
  %v587 = vpop.permute.xlu0 %586
  %v589 = vadd.f32 %v579, %v587
  %v590 = vtanh.pop %v589
  %592 = vrot.lane.b32.xlu0 %v590, 8
  %v593 = vpop.permute.xlu0 %592
  %v595 = vmul.f32 %v577, %v593
  %597 = vrot.lane.b32.xlu0 %v595, 116
  %v598 = vpop.permute.xlu0 %597
  %s600 = scalar_lea.vmem [#allocation4], 8
  %601 = vst.msk [vmem:[%s600] sm:$0xff] %vm106, %v598
  %s602 = scalar_lea.vmem [#allocation5], 16
  %v603 = vld [vmem:[%s602] sm:$0xff]
  %v604 = vsel %vm106, %v598, 0
  %606 = vmatpush.msra.mxu0 0.0
  %607 = vmatpush.msra.mxu0 0.0
  %608 = vmatpush.msra.mxu0 0.0
  %609 = vmatpush.msra.mxu0 0.0
  %610 = vmatpush.msra.mxu0 0.0
  %611 = vmatpush.msra.mxu0 0.0
  %612 = vmatpush.msra.mxu0 0.0
  %613 = vmatpush.msra.mxu0 0.0
  %614 = vmatpush.msra.mxu0 0.0
  %615 = vmatpush.msra.mxu0 0.0
  %616 = vmatpush.msra.mxu0 0.0
  %617 = vmatpush.msra.mxu0 0.0
  %618 = vmatpush.msra.mxu0 0.0
  %619 = vmatpush.msra.mxu0 0.0
  %620 = vmatpush.msra.mxu0 0.0
  %621 = vmatpush.msra.mxu0 %v465
  %622 = vmatmul.f32.gmra.mxu0 %v604
  %v623 = vpop.f32.mrf.mxu0
  %v624 = vadd.f32 0.0, %v623
  %625 = vdwg.mxu0
  %v626 = vadd.f32 %v603, %v624
  %v627 = vxor.u32 %v626, 2147483648
  %v628 = vmul.f32 %v627, 1.442695
  %v629 = vpow.pop %v628
  %v630 = vadd.f32 %v629, 1.0
  %v631 = vrcp.pop %v630
  %v632 = vmul.f32 %v630, %v631
  %v633 = vsub.f32 1.0, %v632
  %v634 = vmul.f32 %v631, %v633
  %v635 = vadd.f32 %v631, %v634
  %vm636 = vweird.f32 %v630
  %vm637 = vweird.f32 %v631
  %vm638 = vmor %vm636, %vm637
  %v639 = vsel %vm638, %v631, %v635
  %v640 = vand.u32 2147483647, %v630
  %vm641 = vcmp.eq.f32.partialorder %v640, 8.507059e+37
  %v642 = vand.u32 %v630, 2147483648
  %v643 = vor.u32 1.1754944e-38, %v642
  %v644 = vsel %vm641, %v643, %v639
  %v645 = vmul.f32 1.0, %v644
  %v646 = vtanh.pop %v626
  %v647 = vmul.f32 %v645, %v589
  %649 = vrot.lane.b32.xlu0 %v646, 120
  %v650 = vpop.permute.xlu0 %649
  %v652 = vmul.f32 %v645, %v650
  %654 = vrot.lane.b32.xlu0 %v652, 4
  %v655 = vpop.permute.xlu0 %654
  %v657 = vadd.f32 %v647, %v655
  %v658 = vtanh.pop %v657
  %660 = vrot.lane.b32.xlu0 %v658, 8
  %v661 = vpop.permute.xlu0 %660
  %v663 = vmul.f32 %v645, %v661
  %665 = vrot.lane.b32.xlu0 %v663, 116
  %v666 = vpop.permute.xlu0 %665
  %s668 = scalar_lea.vmem [#allocation4], 16
  %669 = vst.msk [vmem:[%s668] sm:$0xff] %vm106, %v666
  %s670 = scalar_lea.vmem [#allocation5], 24
  %v671 = vld [vmem:[%s670] sm:$0xff]
  %v672 = vsel %vm106, %v666, 0
  %674 = vmatpush.msra.mxu0 0.0
  %675 = vmatpush.msra.mxu0 0.0
  %676 = vmatpush.msra.mxu0 0.0
  %677 = vmatpush.msra.mxu0 0.0
  %678 = vmatpush.msra.mxu0 0.0
  %679 = vmatpush.msra.mxu0 0.0
  %680 = vmatpush.msra.mxu0 0.0
  %681 = vmatpush.msra.mxu0 0.0
  %682 = vmatpush.msra.mxu0 0.0
  %683 = vmatpush.msra.mxu0 0.0
  %684 = vmatpush.msra.mxu0 0.0
  %685 = vmatpush.msra.mxu0 0.0
  %686 = vmatpush.msra.mxu0 0.0
  %687 = vmatpush.msra.mxu0 0.0
  %688 = vmatpush.msra.mxu0 0.0
  %689 = vmatpush.msra.mxu0 %v465
  %690 = vmatmul.f32.gmra.mxu0 %v672
  %v691 = vpop.f32.mrf.mxu0
  %v692 = vadd.f32 0.0, %v691
  %693 = vdwg.mxu0
  %v694 = vadd.f32 %v671, %v692
  %v695 = vxor.u32 %v694, 2147483648
  %v696 = vmul.f32 %v695, 1.442695
  %v697 = vpow.pop %v696
  %v698 = vadd.f32 %v697, 1.0
  %v699 = vrcp.pop %v698
  %v700 = vmul.f32 %v698, %v699
  %v701 = vsub.f32 1.0, %v700
  %v702 = vmul.f32 %v699, %v701
  %v703 = vadd.f32 %v699, %v702
  %vm704 = vweird.f32 %v698
  %vm705 = vweird.f32 %v699
  %vm706 = vmor %vm704, %vm705
  %v707 = vsel %vm706, %v699, %v703
  %v708 = vand.u32 2147483647, %v698
  %vm709 = vcmp.eq.f32.partialorder %v708, 8.507059e+37
  %v710 = vand.u32 %v698, 2147483648
  %v711 = vor.u32 1.1754944e-38, %v710
  %v712 = vsel %vm709, %v711, %v707
  %v713 = vmul.f32 1.0, %v712
  %v714 = vtanh.pop %v694
  %v715 = vmul.f32 %v713, %v657
  %717 = vrot.lane.b32.xlu0 %v714, 120
  %v718 = vpop.permute.xlu0 %717
  %v720 = vmul.f32 %v713, %v718
  %722 = vrot.lane.b32.xlu0 %v720, 4
  %v723 = vpop.permute.xlu0 %722
  %v725 = vadd.f32 %v715, %v723
  %v726 = vtanh.pop %v725
  %728 = vrot.lane.b32.xlu0 %v726, 8
  %v729 = vpop.permute.xlu0 %728
  %v731 = vmul.f32 %v713, %v729
  %733 = vrot.lane.b32.xlu0 %v731, 116
  %v734 = vpop.permute.xlu0 %733
  %s736 = scalar_lea.vmem [#allocation4], 24
  %737 = vst.msk [vmem:[%s736] sm:$0xff] %vm106, %v734
  %s738 = scalar_lea.vmem [#allocation5], 32
  %v739 = vld [vmem:[%s738] sm:$0xff]
  %v740 = vsel %vm106, %v734, 0
  %742 = vmatpush.msra.mxu0 0.0
  %743 = vmatpush.msra.mxu0 0.0
  %744 = vmatpush.msra.mxu0 0.0
  %745 = vmatpush.msra.mxu0 0.0
  %746 = vmatpush.msra.mxu0 0.0
  %747 = vmatpush.msra.mxu0 0.0
  %748 = vmatpush.msra.mxu0 0.0
  %749 = vmatpush.msra.mxu0 0.0
  %750 = vmatpush.msra.mxu0 0.0
  %751 = vmatpush.msra.mxu0 0.0
  %752 = vmatpush.msra.mxu0 0.0
  %753 = vmatpush.msra.mxu0 0.0
  %754 = vmatpush.msra.mxu0 0.0
  %755 = vmatpush.msra.mxu0 0.0
  %756 = vmatpush.msra.mxu0 0.0
  %757 = vmatpush.msra.mxu0 %v465
  %758 = vmatmul.f32.gmra.mxu0 %v740
  %v759 = vpop.f32.mrf.mxu0
  %v760 = vadd.f32 0.0, %v759
  %761 = vdwg.mxu0
  %v762 = vadd.f32 %v739, %v760
  %v763 = vxor.u32 %v762, 2147483648
  %v764 = vmul.f32 %v763, 1.442695
  %v765 = vpow.pop %v764
  %v766 = vadd.f32 %v765, 1.0
  %v767 = vrcp.pop %v766
  %v768 = vmul.f32 %v766, %v767
  %v769 = vsub.f32 1.0, %v768
  %v770 = vmul.f32 %v767, %v769
  %v771 = vadd.f32 %v767, %v770
  %vm772 = vweird.f32 %v766
  %vm773 = vweird.f32 %v767
  %vm774 = vmor %vm772, %vm773
  %v775 = vsel %vm774, %v767, %v771
  %v776 = vand.u32 2147483647, %v766
  %vm777 = vcmp.eq.f32.partialorder %v776, 8.507059e+37
  %v778 = vand.u32 %v766, 2147483648
  %v779 = vor.u32 1.1754944e-38, %v778
  %v780 = vsel %vm777, %v779, %v775
  %v781 = vmul.f32 1.0, %v780
  %v782 = vtanh.pop %v762
  %v783 = vmul.f32 %v781, %v725
  %785 = vrot.lane.b32.xlu0 %v782, 120
  %v786 = vpop.permute.xlu0 %785
  %v788 = vmul.f32 %v781, %v786
  %790 = vrot.lane.b32.xlu0 %v788, 4
  %v791 = vpop.permute.xlu0 %790
  %v793 = vadd.f32 %v783, %v791
  %v794 = vtanh.pop %v793
  %796 = vrot.lane.b32.xlu0 %v794, 8
  %v797 = vpop.permute.xlu0 %796
  %v799 = vmul.f32 %v781, %v797
  %801 = vrot.lane.b32.xlu0 %v799, 116
  %v802 = vpop.permute.xlu0 %801
  %s804 = scalar_lea.vmem [#allocation4], 32
  %805 = vst.msk [vmem:[%s804] sm:$0xff] %vm106, %v802
  %s806 = scalar_lea.vmem [#allocation5], 40
  %v807 = vld [vmem:[%s806] sm:$0xff]
  %v808 = vsel %vm106, %v802, 0
  %810 = vmatpush.msra.mxu0 0.0
  %811 = vmatpush.msra.mxu0 0.0
  %812 = vmatpush.msra.mxu0 0.0
  %813 = vmatpush.msra.mxu0 0.0
  %814 = vmatpush.msra.mxu0 0.0
  %815 = vmatpush.msra.mxu0 0.0
  %816 = vmatpush.msra.mxu0 0.0
  %817 = vmatpush.msra.mxu0 0.0
  %818 = vmatpush.msra.mxu0 0.0
  %819 = vmatpush.msra.mxu0 0.0
  %820 = vmatpush.msra.mxu0 0.0
  %821 = vmatpush.msra.mxu0 0.0
  %822 = vmatpush.msra.mxu0 0.0
  %823 = vmatpush.msra.mxu0 0.0
  %824 = vmatpush.msra.mxu0 0.0
  %825 = vmatpush.msra.mxu0 %v465
  %826 = vmatmul.f32.gmra.mxu0 %v808
  %v827 = vpop.f32.mrf.mxu0
  %v828 = vadd.f32 0.0, %v827
  %829 = vdwg.mxu0
  %v830 = vadd.f32 %v807, %v828
  %v831 = vxor.u32 %v830, 2147483648
  %v832 = vmul.f32 %v831, 1.442695
  %v833 = vpow.pop %v832
  %v834 = vadd.f32 %v833, 1.0
  %v835 = vrcp.pop %v834
  %v836 = vmul.f32 %v834, %v835
  %v837 = vsub.f32 1.0, %v836
  %v838 = vmul.f32 %v835, %v837
  %v839 = vadd.f32 %v835, %v838
  %vm840 = vweird.f32 %v834
  %vm841 = vweird.f32 %v835
  %vm842 = vmor %vm840, %vm841
  %v843 = vsel %vm842, %v835, %v839
  %v844 = vand.u32 2147483647, %v834
  %vm845 = vcmp.eq.f32.partialorder %v844, 8.507059e+37
  %v846 = vand.u32 %v834, 2147483648
  %v847 = vor.u32 1.1754944e-38, %v846
  %v848 = vsel %vm845, %v847, %v843
  %v849 = vmul.f32 1.0, %v848
  %v850 = vtanh.pop %v830
  %v851 = vmul.f32 %v849, %v793
  %853 = vrot.lane.b32.xlu0 %v850, 120
  %v854 = vpop.permute.xlu0 %853
  %v856 = vmul.f32 %v849, %v854
  %858 = vrot.lane.b32.xlu0 %v856, 4
  %v859 = vpop.permute.xlu0 %858
  %v861 = vadd.f32 %v851, %v859
  %v862 = vtanh.pop %v861
  %864 = vrot.lane.b32.xlu0 %v862, 8
  %v865 = vpop.permute.xlu0 %864
  %v867 = vmul.f32 %v849, %v865
  %869 = vrot.lane.b32.xlu0 %v867, 116
  %v870 = vpop.permute.xlu0 %869
  %s872 = scalar_lea.vmem [#allocation4], 40
  %873 = vst.msk [vmem:[%s872] sm:$0xff] %vm106, %v870
  %s874 = scalar_lea.vmem [#allocation5], 48
  %v875 = vld [vmem:[%s874] sm:$0xff]
  %v876 = vsel %vm106, %v870, 0
  %878 = vmatpush.msra.mxu0 0.0
  %879 = vmatpush.msra.mxu0 0.0
  %880 = vmatpush.msra.mxu0 0.0
  %881 = vmatpush.msra.mxu0 0.0
  %882 = vmatpush.msra.mxu0 0.0
  %883 = vmatpush.msra.mxu0 0.0
  %884 = vmatpush.msra.mxu0 0.0
  %885 = vmatpush.msra.mxu0 0.0
  %886 = vmatpush.msra.mxu0 0.0
  %887 = vmatpush.msra.mxu0 0.0
  %888 = vmatpush.msra.mxu0 0.0
  %889 = vmatpush.msra.mxu0 0.0
  %890 = vmatpush.msra.mxu0 0.0
  %891 = vmatpush.msra.mxu0 0.0
  %892 = vmatpush.msra.mxu0 0.0
  %893 = vmatpush.msra.mxu0 %v465
  %894 = vmatmul.f32.gmra.mxu0 %v876
  %v895 = vpop.f32.mrf.mxu0
  %v896 = vadd.f32 0.0, %v895
  %897 = vdwg.mxu0
  %v898 = vadd.f32 %v875, %v896
  %v899 = vxor.u32 %v898, 2147483648
  %v900 = vmul.f32 %v899, 1.442695
  %v901 = vpow.pop %v900
  %v902 = vadd.f32 %v901, 1.0
  %v903 = vrcp.pop %v902
  %v904 = vmul.f32 %v902, %v903
  %v905 = vsub.f32 1.0, %v904
  %v906 = vmul.f32 %v903, %v905
  %v907 = vadd.f32 %v903, %v906
  %vm908 = vweird.f32 %v902
  %vm909 = vweird.f32 %v903
  %vm910 = vmor %vm908, %vm909
  %v911 = vsel %vm910, %v903, %v907
  %v912 = vand.u32 2147483647, %v902
  %vm913 = vcmp.eq.f32.partialorder %v912, 8.507059e+37
  %v914 = vand.u32 %v902, 2147483648
  %v915 = vor.u32 1.1754944e-38, %v914
  %v916 = vsel %vm913, %v915, %v911
  %v917 = vmul.f32 1.0, %v916
  %v918 = vtanh.pop %v898
  %v919 = vmul.f32 %v917, %v861
  %921 = vrot.lane.b32.xlu0 %v918, 120
  %v922 = vpop.permute.xlu0 %921
  %v924 = vmul.f32 %v917, %v922
  %926 = vrot.lane.b32.xlu0 %v924, 4
  %v927 = vpop.permute.xlu0 %926
  %v929 = vadd.f32 %v919, %v927
  %v930 = vtanh.pop %v929
  %932 = vrot.lane.b32.xlu0 %v930, 8
  %v933 = vpop.permute.xlu0 %932
  %v935 = vmul.f32 %v917, %v933
  %937 = vrot.lane.b32.xlu0 %v935, 116
  %v938 = vpop.permute.xlu0 %937
  %s940 = scalar_lea.vmem [#allocation4], 48
  %941 = vst.msk [vmem:[%s940] sm:$0xff] %vm106, %v938
  %s942 = scalar_lea.vmem [#allocation5], 56
  %v943 = vld [vmem:[%s942] sm:$0xff]
  %v944 = vsel %vm106, %v938, 0
  %946 = vmatpush.msra.mxu0 0.0
  %947 = vmatpush.msra.mxu0 0.0
  %948 = vmatpush.msra.mxu0 0.0
  %949 = vmatpush.msra.mxu0 0.0
  %950 = vmatpush.msra.mxu0 0.0
  %951 = vmatpush.msra.mxu0 0.0
  %952 = vmatpush.msra.mxu0 0.0
  %953 = vmatpush.msra.mxu0 0.0
  %954 = vmatpush.msra.mxu0 0.0
  %955 = vmatpush.msra.mxu0 0.0
  %956 = vmatpush.msra.mxu0 0.0
  %957 = vmatpush.msra.mxu0 0.0
  %958 = vmatpush.msra.mxu0 0.0
  %959 = vmatpush.msra.mxu0 0.0
  %960 = vmatpush.msra.mxu0 0.0
  %961 = vmatpush.msra.mxu0 %v465
  %962 = vmatmul.f32.gmra.mxu0 %v944
  %v963 = vpop.f32.mrf.mxu0
  %v964 = vadd.f32 0.0, %v963
  %965 = vdwg.mxu0
  %v966 = vadd.f32 %v943, %v964
  %v967 = vxor.u32 %v966, 2147483648
  %v968 = vmul.f32 %v967, 1.442695
  %v969 = vpow.pop %v968
  %v970 = vadd.f32 %v969, 1.0
  %v971 = vrcp.pop %v970
  %v972 = vmul.f32 %v970, %v971
  %v973 = vsub.f32 1.0, %v972
  %v974 = vmul.f32 %v971, %v973
  %v975 = vadd.f32 %v971, %v974
  %vm976 = vweird.f32 %v970
  %vm977 = vweird.f32 %v971
  %vm978 = vmor %vm976, %vm977
  %v979 = vsel %vm978, %v971, %v975
  %v980 = vand.u32 2147483647, %v970
  %vm981 = vcmp.eq.f32.partialorder %v980, 8.507059e+37
  %v982 = vand.u32 %v970, 2147483648
  %v983 = vor.u32 1.1754944e-38, %v982
  %v984 = vsel %vm981, %v983, %v979
  %v985 = vmul.f32 1.0, %v984
  %v986 = vtanh.pop %v966
  %v987 = vmul.f32 %v985, %v929
  %989 = vrot.lane.b32.xlu0 %v986, 120
  %v990 = vpop.permute.xlu0 %989
  %v992 = vmul.f32 %v985, %v990
  %994 = vrot.lane.b32.xlu0 %v992, 4
  %v995 = vpop.permute.xlu0 %994
  %v997 = vadd.f32 %v987, %v995
  %v998 = vtanh.pop %v997
  %1000 = vrot.lane.b32.xlu0 %v998, 8
  %v1001 = vpop.permute.xlu0 %1000
  %v1003 = vmul.f32 %v985, %v1001
  %1005 = vrot.lane.b32.xlu0 %v1003, 116
  %v1006 = vpop.permute.xlu0 %1005
  %s1008 = scalar_lea.vmem [#allocation4], 56
  %1009 = vst.msk [vmem:[%s1008] sm:$0xff] %vm106, %v1006
  %1010 = vst.msk [vmem:[#allocation2] sm:$0xff] %vm106, %v1006
  %1012 = vrot.lane.b32.xlu0 %v997, 124
  %v1013 = vpop.permute.xlu0 %1012
  %1015 = vst.msk [vmem:[#allocation3] sm:$0xff] %vm106, %v1013
  %v1016 = vld [vmem:[#allocation4] sm:$0xff]
  %v1017 = vld [vmem:[#allocation4 + $0x8] sm:$0xff]
  %v1018 = vld [vmem:[#allocation4 + $0x10] sm:$0xff]
  %v1019 = vld [vmem:[#allocation4 + $0x18] sm:$0xff]
  %v1020 = vld [vmem:[#allocation4 + $0x20] sm:$0xff]
  %v1021 = vld [vmem:[#allocation4 + $0x28] sm:$0xff]
  %v1022 = vld [vmem:[#allocation4 + $0x30] sm:$0xff]
  %v1023 = vld [vmem:[#allocation4 + $0x38] sm:$0xff]
  %v1024 = vsel %vm106, %v1016, 0.0
  %v1025 = vrot.slane %v1024, 4
  %v1026 = vadd.f32 %v1024, %v1025
  %v1027 = vrot.slane %v1026, 2
  %v1028 = vadd.f32 %v1026, %v1027
  %v1029 = vrot.slane %v1028, 1
  %v1030 = vadd.f32 %v1028, %v1029
  %v1031 = vsel %vm106, %v1017, 0.0
  %v1032 = vrot.slane %v1031, 4
  %v1033 = vadd.f32 %v1031, %v1032
  %v1034 = vrot.slane %v1033, 2
  %v1035 = vadd.f32 %v1033, %v1034
  %v1036 = vrot.slane %v1035, 1
  %v1037 = vadd.f32 %v1035, %v1036
  %v1038 = vsel %vm106, %v1018, 0.0
  %v1039 = vrot.slane %v1038, 4
  %v1040 = vadd.f32 %v1038, %v1039
  %v1041 = vrot.slane %v1040, 2
  %v1042 = vadd.f32 %v1040, %v1041
  %v1043 = vrot.slane %v1042, 1
  %v1044 = vadd.f32 %v1042, %v1043
  %v1045 = vsel %vm106, %v1019, 0.0
  %v1046 = vrot.slane %v1045, 4
  %v1047 = vadd.f32 %v1045, %v1046
  %v1048 = vrot.slane %v1047, 2
  %v1049 = vadd.f32 %v1047, %v1048
  %v1050 = vrot.slane %v1049, 1
  %v1051 = vadd.f32 %v1049, %v1050
  %v1052 = vsel %vm106, %v1020, 0.0
  %v1053 = vrot.slane %v1052, 4
  %v1054 = vadd.f32 %v1052, %v1053
  %v1055 = vrot.slane %v1054, 2
  %v1056 = vadd.f32 %v1054, %v1055
  %v1057 = vrot.slane %v1056, 1
  %v1058 = vadd.f32 %v1056, %v1057
  %v1059 = vsel %vm106, %v1021, 0.0
  %v1060 = vrot.slane %v1059, 4
  %v1061 = vadd.f32 %v1059, %v1060
  %v1062 = vrot.slane %v1061, 2
  %v1063 = vadd.f32 %v1061, %v1062
  %v1064 = vrot.slane %v1063, 1
  %v1065 = vadd.f32 %v1063, %v1064
  %v1066 = vsel %vm106, %v1022, 0.0
  %v1067 = vrot.slane %v1066, 4
  %v1068 = vadd.f32 %v1066, %v1067
  %v1069 = vrot.slane %v1068, 2
  %v1070 = vadd.f32 %v1068, %v1069
  %v1071 = vrot.slane %v1070, 1
  %v1072 = vadd.f32 %v1070, %v1071
  %v1073 = vsel %vm106, %v1023, 0.0
  %v1074 = vrot.slane %v1073, 4
  %v1075 = vadd.f32 %v1073, %v1074
  %v1076 = vrot.slane %v1075, 2
  %v1077 = vadd.f32 %v1075, %v1076
  %v1078 = vrot.slane %v1077, 1
  %v1079 = vadd.f32 %v1077, %v1078
  %v1080 = vmul.f32 %v1030, %v169
  %v1081 = vmul.f32 %v1037, %v169
  %v1082 = vmul.f32 %v1044, %v169
  %v1083 = vmul.f32 %v1051, %v169
  %v1084 = vmul.f32 %v1058, %v169
  %v1085 = vmul.f32 %v1065, %v169
  %v1086 = vmul.f32 %v1072, %v169
  %v1087 = vmul.f32 %v1079, %v169
  %v1088 = vsub.f32 %v1016, %v1080
  %v1089 = vsub.f32 %v1017, %v1081
  %v1090 = vsub.f32 %v1018, %v1082
  %v1091 = vsub.f32 %v1019, %v1083
  %v1092 = vsub.f32 %v1020, %v1084
  %v1093 = vsub.f32 %v1021, %v1085
  %v1094 = vsub.f32 %v1022, %v1086
  %v1095 = vsub.f32 %v1023, %v1087
  %v1096 = vmul.f32 %v1088, %v1088
  %v1097 = vmul.f32 %v1089, %v1089
  %v1098 = vmul.f32 %v1090, %v1090
  %v1099 = vmul.f32 %v1091, %v1091
  %v1100 = vmul.f32 %v1092, %v1092
  %v1101 = vmul.f32 %v1093, %v1093
  %v1102 = vmul.f32 %v1094, %v1094
  %v1103 = vmul.f32 %v1095, %v1095
  %v1104 = vsel %vm106, %v1096, 0.0
  %v1105 = vrot.slane %v1104, 4
  %v1106 = vadd.f32 %v1104, %v1105
  %v1107 = vrot.slane %v1106, 2
  %v1108 = vadd.f32 %v1106, %v1107
  %v1109 = vrot.slane %v1108, 1
  %v1110 = vadd.f32 %v1108, %v1109
  %v1111 = vsel %vm106, %v1097, 0.0
  %v1112 = vrot.slane %v1111, 4
  %v1113 = vadd.f32 %v1111, %v1112
  %v1114 = vrot.slane %v1113, 2
  %v1115 = vadd.f32 %v1113, %v1114
  %v1116 = vrot.slane %v1115, 1
  %v1117 = vadd.f32 %v1115, %v1116
  %v1118 = vsel %vm106, %v1098, 0.0
  %v1119 = vrot.slane %v1118, 4
  %v1120 = vadd.f32 %v1118, %v1119
  %v1121 = vrot.slane %v1120, 2
  %v1122 = vadd.f32 %v1120, %v1121
  %v1123 = vrot.slane %v1122, 1
  %v1124 = vadd.f32 %v1122, %v1123
  %v1125 = vsel %vm106, %v1099, 0.0
  %v1126 = vrot.slane %v1125, 4
  %v1127 = vadd.f32 %v1125, %v1126
  %v1128 = vrot.slane %v1127, 2
  %v1129 = vadd.f32 %v1127, %v1128
  %v1130 = vrot.slane %v1129, 1
  %v1131 = vadd.f32 %v1129, %v1130
  %v1132 = vsel %vm106, %v1100, 0.0
  %v1133 = vrot.slane %v1132, 4
  %v1134 = vadd.f32 %v1132, %v1133
  %v1135 = vrot.slane %v1134, 2
  %v1136 = vadd.f32 %v1134, %v1135
  %v1137 = vrot.slane %v1136, 1
  %v1138 = vadd.f32 %v1136, %v1137
  %v1139 = vsel %vm106, %v1101, 0.0
  %v1140 = vrot.slane %v1139, 4
  %v1141 = vadd.f32 %v1139, %v1140
  %v1142 = vrot.slane %v1141, 2
  %v1143 = vadd.f32 %v1141, %v1142
  %v1144 = vrot.slane %v1143, 1
  %v1145 = vadd.f32 %v1143, %v1144
  %v1146 = vsel %vm106, %v1102, 0.0
  %v1147 = vrot.slane %v1146, 4
  %v1148 = vadd.f32 %v1146, %v1147
  %v1149 = vrot.slane %v1148, 2
  %v1150 = vadd.f32 %v1148, %v1149
  %v1151 = vrot.slane %v1150, 1
  %v1152 = vadd.f32 %v1150, %v1151
  %v1153 = vsel %vm106, %v1103, 0.0
  %v1154 = vrot.slane %v1153, 4
  %v1155 = vadd.f32 %v1153, %v1154
  %v1156 = vrot.slane %v1155, 2
  %v1157 = vadd.f32 %v1155, %v1156
  %v1158 = vrot.slane %v1157, 1
  %v1159 = vadd.f32 %v1157, %v1158
  %v1160 = vmul.f32 %v1110, %v169
  %v1161 = vmul.f32 %v1117, %v169
  %v1162 = vmul.f32 %v1124, %v169
  %v1163 = vmul.f32 %v1131, %v169
  %v1164 = vmul.f32 %v1138, %v169
  %v1165 = vmul.f32 %v1145, %v169
  %v1166 = vmul.f32 %v1152, %v169
  %v1167 = vmul.f32 %v1159, %v169
  %v1168 = vadd.f32 %v1160, 1e-05
  %v1169 = vadd.f32 %v1161, 1e-05
  %v1170 = vadd.f32 %v1162, 1e-05
  %v1171 = vadd.f32 %v1163, 1e-05
  %v1172 = vadd.f32 %v1164, 1e-05
  %v1173 = vadd.f32 %v1165, 1e-05
  %v1174 = vadd.f32 %v1166, 1e-05
  %v1175 = vadd.f32 %v1167, 1e-05
  %v1176 = vrsqrt.pop %v1168
  %v1177 = vmul.f32 %v1176, %v1168
  %v1178 = vmul.f32 %v1177, %v1176
  %v1179 = vmul.f32 0.5, %v1178
  %v1180 = vsub.f32 1.5, %v1179
  %v1181 = vmul.f32 %v1176, %v1180
  %vm1182 = vweird.f32 %v1168
  %vm1183 = vweird.f32 %v1176
  %vm1184 = vmor %vm1182, %vm1183
  %v1185 = vsel %vm1184, %v1176, %v1181
  %v1186 = vrsqrt.pop %v1169
  %v1187 = vmul.f32 %v1186, %v1169
  %v1188 = vmul.f32 %v1187, %v1186
  %v1189 = vmul.f32 0.5, %v1188
  %v1190 = vsub.f32 1.5, %v1189
  %v1191 = vmul.f32 %v1186, %v1190
  %vm1192 = vweird.f32 %v1169
  %vm1193 = vweird.f32 %v1186
  %vm1194 = vmor %vm1192, %vm1193
  %v1195 = vsel %vm1194, %v1186, %v1191
  %v1196 = vrsqrt.pop %v1170
  %v1197 = vmul.f32 %v1196, %v1170
  %v1198 = vmul.f32 %v1197, %v1196
  %v1199 = vmul.f32 0.5, %v1198
  %v1200 = vsub.f32 1.5, %v1199
  %v1201 = vmul.f32 %v1196, %v1200
  %vm1202 = vweird.f32 %v1170
  %vm1203 = vweird.f32 %v1196
  %vm1204 = vmor %vm1202, %vm1203
  %v1205 = vsel %vm1204, %v1196, %v1201
  %v1206 = vrsqrt.pop %v1171
  %v1207 = vmul.f32 %v1206, %v1171
  %v1208 = vmul.f32 %v1207, %v1206
  %v1209 = vmul.f32 0.5, %v1208
  %v1210 = vsub.f32 1.5, %v1209
  %v1211 = vmul.f32 %v1206, %v1210
  %vm1212 = vweird.f32 %v1171
  %vm1213 = vweird.f32 %v1206
  %vm1214 = vmor %vm1212, %vm1213
  %v1215 = vsel %vm1214, %v1206, %v1211
  %v1216 = vrsqrt.pop %v1172
  %v1217 = vmul.f32 %v1216, %v1172
  %v1218 = vmul.f32 %v1217, %v1216
  %v1219 = vmul.f32 0.5, %v1218
  %v1220 = vsub.f32 1.5, %v1219
  %v1221 = vmul.f32 %v1216, %v1220
  %vm1222 = vweird.f32 %v1172
  %vm1223 = vweird.f32 %v1216
  %vm1224 = vmor %vm1222, %vm1223
  %v1225 = vsel %vm1224, %v1216, %v1221
  %v1226 = vrsqrt.pop %v1173
  %v1227 = vmul.f32 %v1226, %v1173
  %v1228 = vmul.f32 %v1227, %v1226
  %v1229 = vmul.f32 0.5, %v1228
  %v1230 = vsub.f32 1.5, %v1229
  %v1231 = vmul.f32 %v1226, %v1230
  %vm1232 = vweird.f32 %v1173
  %vm1233 = vweird.f32 %v1226
  %vm1234 = vmor %vm1232, %vm1233
  %v1235 = vsel %vm1234, %v1226, %v1231
  %v1236 = vrsqrt.pop %v1174
  %v1237 = vmul.f32 %v1236, %v1174
  %v1238 = vmul.f32 %v1237, %v1236
  %v1239 = vmul.f32 0.5, %v1238
  %v1240 = vsub.f32 1.5, %v1239
  %v1241 = vmul.f32 %v1236, %v1240
  %vm1242 = vweird.f32 %v1174
  %vm1243 = vweird.f32 %v1236
  %vm1244 = vmor %vm1242, %vm1243
  %v1245 = vsel %vm1244, %v1236, %v1241
  %v1246 = vrsqrt.pop %v1175
  %v1247 = vmul.f32 %v1246, %v1175
  %v1248 = vmul.f32 %v1247, %v1246
  %v1249 = vmul.f32 0.5, %v1248
  %v1250 = vsub.f32 1.5, %v1249
  %v1251 = vmul.f32 %v1246, %v1250
  %vm1252 = vweird.f32 %v1175
  %vm1253 = vweird.f32 %v1246
  %vm1254 = vmor %vm1252, %vm1253
  %v1255 = vsel %vm1254, %v1246, %v1251
  %v1256 = vmul.f32 %v1088, %v1185
  %v1257 = vmul.f32 %v1089, %v1195
  %v1258 = vmul.f32 %v1090, %v1205
  %v1259 = vmul.f32 %v1091, %v1215
  %v1260 = vmul.f32 %v1092, %v1225
  %v1261 = vmul.f32 %v1093, %v1235
  %v1262 = vmul.f32 %v1094, %v1245
  %v1263 = vmul.f32 %v1095, %v1255
  %v1264 = vperm.slane %v26, 4
  %v1265 = vmul.f32 %v1256, %v1264
  %v1266 = vmul.f32 %v1257, %v1264
  %v1267 = vmul.f32 %v1258, %v1264
  %v1268 = vmul.f32 %v1259, %v1264
  %v1269 = vmul.f32 %v1260, %v1264
  %v1270 = vmul.f32 %v1261, %v1264
  %v1271 = vmul.f32 %v1262, %v1264
  %v1272 = vmul.f32 %v1263, %v1264
  %v1273 = vperm.slane %v26, 5
  %v1274 = vadd.f32 %v1265, %v1273
  %v1275 = vadd.f32 %v1266, %v1273
  %v1276 = vadd.f32 %v1267, %v1273
  %v1277 = vadd.f32 %v1268, %v1273
  %v1278 = vadd.f32 %v1269, %v1273
  %v1279 = vadd.f32 %v1270, %v1273
  %v1280 = vadd.f32 %v1271, %v1273
  %v1281 = vadd.f32 %v1272, %v1273
  %1283 = vset.pattern.permute.xlu0 8
  %1284 = vperm.xlu0 %1283, %v25
  %v1285 = vpop.permute.xlu0 %1284
  %v1287 = vsel %vm106, %v25, 0
  %v1290 = vsel %vm106, %v1274, 0
  %v1293 = vsel %vm106, %v1275, 0
  %v1296 = vsel %vm106, %v1276, 0
  %v1299 = vsel %vm106, %v1277, 0
  %v1302 = vsel %vm106, %v1278, 0
  %v1305 = vsel %vm106, %v1279, 0
  %v1308 = vsel %vm106, %v1280, 0
  %v1311 = vsel %vm106, %v1281, 0
  %1313 = vmatpush.xpose.msra.mxu0 0.0
  %1314 = vmatpush.xpose.msra.mxu0 0.0
  %1315 = vmatpush.xpose.msra.mxu0 0.0
  %1316 = vmatpush.xpose.msra.mxu0 0.0
  %1317 = vmatpush.xpose.msra.mxu0 0.0
  %1318 = vmatpush.xpose.msra.mxu0 0.0
  %1319 = vmatpush.xpose.msra.mxu0 0.0
  %1320 = vmatpush.xpose.msra.mxu0 0.0
  %1321 = vmatpush.xpose.msra.mxu0 %v1311
  %1322 = vmatpush.xpose.msra.mxu0 %v1308
  %1323 = vmatpush.xpose.msra.mxu0 %v1305
  %1324 = vmatpush.xpose.msra.mxu0 %v1302
  %1325 = vmatpush.xpose.msra.mxu0 %v1299
  %1326 = vmatpush.xpose.msra.mxu0 %v1296
  %1327 = vmatpush.xpose.msra.mxu0 %v1293
  %1328 = vmatpush.xpose.msra.mxu0 %v1290
  %1329 = vmatmul.f32.gmra.mxu0 %v1287
  %v1330 = vpop.f32.mrf.mxu0
  %v1331 = vadd.f32 %v1285, %v1330
  %1332 = vdwg.mxu0
  %vm1333 = vcmask 523264
  %1334 = vst.msk [vmem:[%s3] sm:$0xff] %vm1333, %v1331
  // Predicated region
  $region18: #{flow_prediction_forward.1} parent=0 // pred_check
    _
  $region19: #{flow_prediction_forward.1} parent=0 // pred_check_branch
    %1336 = sbr.rel (0) target = $region21
  $region20: #{flow_prediction_forward.1} parent=0 // pred_region
    _
  $region21: #{flow_prediction_forward.1} parent=0 // pred_fallthru
    _
  // Predicated region
  $region22: #{flow_prediction_forward.1} parent=0 // pred_check
    _
  $region23: #{flow_prediction_forward.1} parent=0 // pred_check_branch
    %1338 = sbr.rel (0) target = $region25
  $region24: #{flow_prediction_forward.1} parent=0 // pred_region
    _
  $region25: #{flow_prediction_forward.1} parent=0 // pred_fallthru
    _

</llo_original>
